<compile_context>
chip_gen: v5e
topology: v5e:2x2
jax: 0.10.0
libtpu: 0.0.40
codegen_flags: <defaults>
</compile_context>

<pallas_src>
import functools

import jax
import jax.numpy as jnp
from jax.experimental import pallas as pl
from jax.experimental.pallas import tpu as pltpu


def _elu(x):
    # torch.nn.ELU(alpha=1.0)
    return jnp.where(x > 0, x, jnp.expm1(x))


def _round_up(x, m):
    return ((x + m - 1) // m) * m


# ----------------------------- kernel net (SIREN) -----------------------------
def _mm_exact(a, b, bias):
    # (M, K) @ (K, N) + (1, N) with exact f32 products on the VPU.  K is tiny and
    # this runs once; it avoids MXU bf16-pass rounding that omega_0 would amplify.
    out = jnp.broadcast_to(bias, (a.shape[0], b.shape[1]))
    for i in range(a.shape[1]):
        out = out + a[:, i:i + 1] * b[i:i + 1, :]
    return out


def _kernelnet_kernel(pos_ref, w1_ref, b1_ref, w2_ref, b2_ref, w3_ref, b3_ref,
                      out_ref, *, omega_0):
    pos = pos_ref[...]                                              # (L, 1)
    h = jnp.sin(omega_0 * (pos * w1_ref[...] + b1_ref[...]))        # (L, H)
    h = jnp.sin(omega_0 * _mm_exact(h, w2_ref[...], b2_ref[...]))   # (L, H)
    out_ref[...] = _mm_exact(h, w3_ref[...], b3_ref[...])           # (L, C)


def kernelnet(pos, w1, b1, w2, b2, w3, b3, *, omega_0):
    L = pos.shape[0]
    C = w3.shape[1]
    full = lambda a: pl.BlockSpec(a.shape, lambda i: (0, 0))        # all params are 2-D
    return pl.pallas_call(
        functools.partial(_kernelnet_kernel, omega_0=omega_0),
        out_shape=jax.ShapeDtypeStruct((L, C), jnp.float32),
        grid=(1,),
        in_specs=[full(a) for a in (pos, w1, b1, w2, b2, w3, b3)],
        out_specs=pl.BlockSpec((L, C), lambda i: (0, 0)),
    )(pos, w1, b1, w2, b2, w3, b3)


# --------------------- tiling plan & one-time weight prep ---------------------
def plan_tiles(B, c_in, c_out, L, *, b_tile_max=256,
               vmem_budget_bytes=22 * 1024 * 1024):
    """Pick (L_pad, time tile tt, batch tile bt) against an explicit VMEM budget
    (double-buffered blocks + accumulator + ELU temp), so the same plan fits
    v5e / v6e (128 MiB) and v7x (64 MiB physical / 32 MiB scoped)."""
    L_pad = _round_up(L, 128)
    bt = min(b_tile_max, _round_up(B, 16))       # multiple of 16 for bf16 packing
    tt = 128                                     # always legal fallback
    for cand in range(128, L_pad + 1, 128):
        if L_pad % cand:
            continue
        est = (2 * bt * c_out * cand * 4         # f32 accumulator + ELU temp
               + 2 * cand * c_out * cand * 2     # W block, double buffered (bf16)
               + 2 * bt * cand * 2               # matmul-LHS x block (bf16)
               + 2 * bt * c_in * cand * 2        # shortcut x slab (bf16)
               + 2 * bt * c_out * cand * 4       # output block (f32)
               + 2 * c_out * cand * 4)           # bias block (f32)
        if est <= vmem_budget_bytes:
            tt = cand
    return L_pad, tt, bt


def build_ckblock_weights(pos, siren_params, bn_params, ckb, lw, lb, sw, sb,
                          *, omega_0, eps, L_pad, tt):
    """Run the Pallas kernel net, then build the causal Toeplitz conv matrix with
    eval-mode BatchNorm folded in (one-time, plain XLA, built blockwise to bound
    peak memory at O(c_in*c_out*L_pad*tt) instead of O(c_in*c_out*L^2)).

    Layouts consumed by the main kernel:
      rows    : [i * L_pad + tau]                      (input channel, input time)
      columns : [nb * (c_out*tt) + o * tt + t_local]   (time block, out channel, t)
    """
    L = pos.shape[0]
    c_out, c_in = sw.shape
    nkt = L_pad // tt
    hi = jax.lax.Precision.HIGHEST

    knet = kernelnet(pos, *siren_params, omega_0=omega_0)          # (L, c_out*c_in)
    wker = knet.T.reshape(c_out, c_in, L)                          # w[o, i, k]

    gamma, beta, mean, var = bn_params
    s = gamma * jax.lax.rsqrt(var + eps)                           # (c_in,)
    off = beta - mean * s                                          # (c_in,)

    tau = jnp.arange(L_pad)
    w_cols, b_cols = [], []
    for nb in range(nkt):
        t = nb * tt + jnp.arange(tt)
        d = t[None, :] - tau[:, None]                              # (L_pad, tt)
        kk = jnp.clip((L - 1) - d, 0, L - 1)
        valid = (d >= 0) & (d <= L - 1)                            # causal, kernel length L
        blk = jnp.where(valid[None, None], wker[:, :, kk], 0.0)    # (c_out,c_in,L_pad,tt)
        w_raw = jnp.transpose(blk, (1, 2, 0, 3)).reshape(c_in * L_pad, c_out * tt)
        # BN offset folded into the bias, BN scale folded into the weights.
        b_blk = jnp.dot(jnp.repeat(off, L_pad), w_raw, precision=hi)
        b_blk = b_blk + jnp.repeat(ckb, tt)
        w_cols.append((w_raw * jnp.repeat(s, L_pad)[:, None]).astype(jnp.bfloat16))
        b_cols.append(b_blk.astype(jnp.float32))
    W = jnp.concatenate(w_cols, axis=1)                            # (c_in*L_pad, c_out*L_pad)
    bias = jnp.concatenate(b_cols)[None, :]                        # (1, c_out*L_pad)

    # Pointwise / shortcut params: row o = [lw[o,:], lb[o], sw[o,:], sb[o]].
    packed = jnp.concatenate(
        [lw, lb.reshape(c_out, 1), sw, sb.reshape(c_out, 1)], axis=1).astype(jnp.float32)
    return W, bias, packed


# ------------------------------ main CKBlock kernel ---------------------------
def _ckblock_kernel(xk_ref, w_ref, xf_ref, bias_ref, p_ref, out_ref, acc_ref,
                    *, c_in, c_out, tt):
    n = pl.program_id(1)          # output time block
    k = pl.program_id(2)          # contraction step: kt = k // c_in, i = k % c_in
    kt = k // c_in

    @pl.when(k == 0)
    def _init():
        # Conv bias (with the eval-mode BN offset folded in) seeds the accumulator.
        acc_ref[...] = jnp.broadcast_to(bias_ref[...], acc_ref.shape)

    @pl.when(kt <= n)
    def _accumulate():
        # Causal CKConv slice: (bt, tt) @ (tt, c_out*tt) on the MXU, bf16 in / f32 acc.
        # K blocks with kt > n hit an all-zero region of the Toeplitz and are skipped
        # (their W / x DMAs are also elided by the clamped index_maps in the wrapper).
        acc_ref[...] += jnp.dot(xk_ref[...], w_ref[...],
                                preferred_element_type=jnp.float32)

    @pl.when(k == pl.num_programs(2) - 1)
    def _finalize():
        # ELU after CKConv.  TODO(synk): Dropout is eval-mode identity (no RNG mask).
        h = _elu(acc_ref[...])                        # (bt, c_out*tt), cols [o*tt + t]
        xs = [xf_ref[:, i, :].astype(jnp.float32) for i in range(c_in)]
        for o in range(c_out):
            # Pointwise Linear1d(c_out -> c_out): per-timestep channel mix with scalar
            # weights read from SMEM, lane-aligned (tt % 128 == 0) slices on the VPU.
            v = h[:, 0:tt] * p_ref[o, 0]
            for c in range(1, c_out):
                v = v + h[:, c * tt:(c + 1) * tt] * p_ref[o, c]
            v = _elu(v + p_ref[o, c_out])
            # Shortcut Linear1d(c_in -> c_out) on the raw input slab (same time block).
            sc = xs[0] * p_ref[o, c_out + 1]
            for i in range(1, c_in):
                sc = sc + xs[i] * p_ref[o, c_out + 1 + i]
            sc = sc + p_ref[o, c_out + 1 + c_in]
            # Residual add + final ELU, stored directly into a lane-aligned slice.
            out_ref[:, o * tt:(o + 1) * tt] = _elu(v + sc).astype(out_ref.dtype)


def ckblock_forward(x, conv_w, conv_bias, packed, *, L_pad, tt, bt):
    B, c_in, L = x.shape
    c_out = packed.shape[0]
    nkt = L_pad // tt
    kdim = c_in * L_pad
    ndim = c_out * L_pad
    assert conv_w.shape == (kdim, ndim) and conv_bias.shape == (1, ndim)

    b_pad = _round_up(B, bt)
    # Zero-pad batch + time; cast to bf16 once (halves x DMA, no in-kernel casts).
    x3 = jnp.zeros((b_pad, c_in, L_pad), jnp.bfloat16)
    x3 = x3.at[:B, :, :L].set(x.astype(jnp.bfloat16))
    x2 = x3.reshape(b_pad, kdim)                       # rows [i*L_pad + tau]

    n_k = c_in * nkt

    def _clamped(n, k):
        # Last K step that still touches a non-zero Toeplitz block for time block n.
        # Clamping invalid steps to it repeats the block index, so Pallas elides the
        # corresponding W / x DMAs for the skipped (all-zero) causal blocks.
        ke = jnp.minimum(k, (n + 1) * c_in - 1)
        return (ke % c_in) * nkt + ke // c_in

    out2d = pl.pallas_call(
        functools.partial(_ckblock_kernel, c_in=c_in, c_out=c_out, tt=tt),
        out_shape=jax.ShapeDtypeStruct((b_pad, ndim), jnp.float32),
        grid=(b_pad // bt, nkt, n_k),
        in_specs=[
            pl.BlockSpec((bt, tt), lambda b, n, k: (b, _clamped(n, k))),          # x (MXU LHS)
            pl.BlockSpec((tt, c_out * tt), lambda b, n, k: (_clamped(n, k), n)),  # Toeplitz W
            pl.BlockSpec((bt, c_in, tt), lambda b, n, k: (b, 0, n)),              # x slab (shortcut)
            pl.BlockSpec((1, c_out * tt), lambda b, n, k: (0, n)),                # conv bias
            pl.BlockSpec(memory_space=pltpu.MemorySpace.SMEM),                    # lw/lb/sw/sb
        ],
        out_specs=pl.BlockSpec((bt, c_out * tt), lambda b, n, k: (b, n)),
        scratch_shapes=[pltpu.VMEM((bt, c_out * tt), jnp.float32)],
        compiler_params=pltpu.CompilerParams(
            dimension_semantics=("parallel", "parallel", "arbitrary"),
            vmem_limit_bytes=32 * 1024 * 1024),
    )(x2, conv_w, x3, conv_bias, packed)

    # Undo the blocked [time-block, out-channel, t_local] column layout.
    out = out2d[:B].reshape(B, nkt, c_out, tt).transpose(0, 2, 1, 3)
    return out.reshape(B, c_out, L_pad)[:, :, :L]


if __name__ == "__main__":
    B, C_IN, C_OUT, L, HID = 2, 4, 8, 16, 32
    OMEGA_0 = 30.0
    EPS = 1e-5

    key = jax.random.PRNGKey(0)
    ks = jax.random.split(key, 10)

    # Kernel-net (SIREN) parameters: 1 -> HID -> HID -> C_OUT*C_IN.
    # TODO(synk): exact whistlenet KernelNet config (omega_0, norm layers, init gains) approximated.
    w1 = jax.random.normal(ks[0], (1, HID), jnp.float32)
    b1 = jax.random.normal(ks[1], (1, HID), jnp.float32) * 0.1
    w2 = jax.random.normal(ks[2], (HID, HID), jnp.float32) * (jnp.sqrt(6.0 / HID) / OMEGA_0)
    b2 = jax.random.normal(ks[3], (1, HID), jnp.float32) * 0.1
    w3 = jax.random.normal(ks[4], (HID, C_OUT * C_IN), jnp.float32) * jnp.sqrt(1.0 / HID)
    b3 = jnp.zeros((1, C_OUT * C_IN), jnp.float32)

    # Relative positions for the continuous kernel (length == sequence length).
    pos = jnp.linspace(-1.0, 1.0, L, dtype=jnp.float32).reshape(L, 1)

    # PyTorch BatchNorm1d defaults (eval mode) and the block's linear layers.
    bn_gamma = jnp.ones((C_IN,), jnp.float32)
    bn_beta = jnp.zeros((C_IN,), jnp.float32)
    bn_mean = jnp.zeros((C_IN,), jnp.float32)
    bn_var = jnp.ones((C_IN,), jnp.float32)
    ckb = jax.random.normal(ks[5], (C_OUT,), jnp.float32) * 0.1
    lw = jax.random.normal(ks[6], (C_OUT, C_OUT), jnp.float32) / jnp.sqrt(C_OUT)
    lb = jax.random.normal(ks[7], (C_OUT,), jnp.float32) * 0.1
    sw = jax.random.normal(ks[8], (C_OUT, C_IN), jnp.float32) / jnp.sqrt(C_IN)
    sb = jax.random.normal(ks[9], (C_OUT,), jnp.float32) * 0.1

    x = jax.random.normal(jax.random.PRNGKey(42), (B, C_IN, L), jnp.float32)

    L_PAD, TT, BT = plan_tiles(B, C_IN, C_OUT, L)
    conv_w, conv_bias, packed = build_ckblock_weights(
        pos, (w1, b1, w2, b2, w3, b3), (bn_gamma, bn_beta, bn_mean, bn_var),
        ckb, lw, lb, sw, sb, omega_0=OMEGA_0, eps=EPS, L_pad=L_PAD, tt=TT)

    out = ckblock_forward(x, conv_w, conv_bias, packed, L_pad=L_PAD, tt=TT, bt=BT)
    out = jax.block_until_ready(out)

    # Pure-JAX reference (same math, HIGHEST precision) for a sanity check.
    hi = jax.lax.Precision.HIGHEST
    h = jnp.sin(OMEGA_0 * (pos * w1 + b1))
    h = jnp.sin(OMEGA_0 * (jnp.dot(h, w2, precision=hi) + b2))
    ck_ref = (jnp.dot(h, w3, precision=hi) + b3).T.reshape(C_OUT, C_IN, L)
    xb = ((x - bn_mean[None, :, None]) * jax.lax.rsqrt(bn_var[None, :, None] + EPS)
          * bn_gamma[None, :, None] + bn_beta[None, :, None])
    conv = jax.lax.conv_general_dilated(
        xb, ck_ref, window_strides=(1,), padding=[(L - 1, 0)],
        dimension_numbers=("NCH", "OIH", "NCH"), precision=hi) + ckb[None, :, None]
    r = _elu(conv)
    r = jnp.einsum("oc,bcl->bol", lw, r, precision=hi) + lb[None, :, None]
    r = _elu(r)
    sc = jnp.einsum("oc,bcl->bol", sw, x, precision=hi) + sb[None, :, None]
    ref = _elu(r + sc)

    assert out.shape == (B, C_OUT, L)
    assert bool(jnp.isfinite(out).all())
    err = float(jnp.max(jnp.abs(out - ref)))
    assert bool(jnp.allclose(out, ref, atol=5e-2, rtol=5e-2)), err
    print("KERNEL_OK")
</pallas_src>

<mosaic_0001>
module attributes {stable_mosaic.version = 11 : i64} {
  func.func @_kernelnet_kernel(%arg0: i32, %arg1: memref<16x1xf32, #tpu.memory_space<vmem>>, %arg2: memref<1x32xf32, #tpu.memory_space<vmem>>, %arg3: memref<1x32xf32, #tpu.memory_space<vmem>>, %arg4: memref<32x32xf32, #tpu.memory_space<vmem>>, %arg5: memref<1x32xf32, #tpu.memory_space<vmem>>, %arg6: memref<32x32xf32, #tpu.memory_space<vmem>>, %arg7: memref<1x32xf32, #tpu.memory_space<vmem>>, %arg8: memref<16x32xf32, #tpu.memory_space<vmem>>) attributes {dimension_semantics = [#tpu.dimension_semantics<arbitrary>], iteration_bounds = array<i64: 1>, scalar_prefetch = 0 : i64, scratch_operands = 0 : i64, tpu.core_type = #tpu.core_type<tc>, window_params = [{pipeline_mode = #tpu.pipeline_mode<synchronous>, transform_indices = @transform_0, window_bounds = array<i64: 16, 1>}, {pipeline_mode = #tpu.pipeline_mode<synchronous>, transform_indices = @transform_1, window_bounds = array<i64: 1, 32>}, {pipeline_mode = #tpu.pipeline_mode<synchronous>, transform_indices = @transform_2, window_bounds = array<i64: 1, 32>}, {pipeline_mode = #tpu.pipeline_mode<synchronous>, transform_indices = @transform_3, window_bounds = array<i64: 32, 32>}, {pipeline_mode = #tpu.pipeline_mode<synchronous>, transform_indices = @transform_4, window_bounds = array<i64: 1, 32>}, {pipeline_mode = #tpu.pipeline_mode<synchronous>, transform_indices = @transform_5, window_bounds = array<i64: 32, 32>}, {pipeline_mode = #tpu.pipeline_mode<synchronous>, transform_indices = @transform_6, window_bounds = array<i64: 1, 32>}, {pipeline_mode = #tpu.pipeline_mode<synchronous>, transform_indices = @transform_7, window_bounds = array<i64: 16, 32>}]} {
    %c0 = arith.constant 0 : index
    %c0_0 = arith.constant 0 : index
    %0 = vector.load %arg1[%c0, %c0_0] : memref<16x1xf32, #tpu.memory_space<vmem>>, vector<16x1xf32>
    %c0_1 = arith.constant 0 : index
    %c0_2 = arith.constant 0 : index
    %1 = vector.load %arg2[%c0_1, %c0_2] : memref<1x32xf32, #tpu.memory_space<vmem>>, vector<1x32xf32>
    %2 = vector.broadcast %0 : vector<16x1xf32> to vector<16x32xf32>
    %3 = vector.broadcast %1 : vector<1x32xf32> to vector<16x32xf32>
    %4 = arith.mulf %2, %3 : vector<16x32xf32>
    %c0_3 = arith.constant 0 : index
    %c0_4 = arith.constant 0 : index
    %5 = vector.load %arg3[%c0_3, %c0_4] : memref<1x32xf32, #tpu.memory_space<vmem>>, vector<1x32xf32>
    %6 = vector.broadcast %5 : vector<1x32xf32> to vector<16x32xf32>
    %7 = arith.addf %4, %6 : vector<16x32xf32>
    %cst = arith.constant 3.000000e+01 : f32
    %8 = vector.broadcast %cst : f32 to vector<16x32xf32>
    %9 = arith.mulf %8, %7 : vector<16x32xf32>
    %10 = math.sin %9 : vector<16x32xf32>
    %c0_5 = arith.constant 0 : index
    %c0_6 = arith.constant 0 : index
    %11 = vector.load %arg4[%c0_5, %c0_6] : memref<32x32xf32, #tpu.memory_space<vmem>>, vector<32x32xf32>
    %c0_7 = arith.constant 0 : index
    %c0_8 = arith.constant 0 : index
    %12 = vector.load %arg5[%c0_7, %c0_8] : memref<1x32xf32, #tpu.memory_space<vmem>>, vector<1x32xf32>
    %13 = vector.shape_cast %12 : vector<1x32xf32> to vector<1x32xf32>
    %14 = vector.broadcast %13 : vector<1x32xf32> to vector<16x32xf32>
    %15 = vector.extract_strided_slice %10 {offsets = [0, 0], sizes = [16, 1], strides = [1, 1]} : vector<16x32xf32> to vector<16x1xf32>
    %16 = vector.extract_strided_slice %11 {offsets = [0, 0], sizes = [1, 32], strides = [1, 1]} : vector<32x32xf32> to vector<1x32xf32>
    %17 = vector.broadcast %15 : vector<16x1xf32> to vector<16x32xf32>
    %18 = vector.broadcast %16 : vector<1x32xf32> to vector<16x32xf32>
    %19 = arith.mulf %17, %18 : vector<16x32xf32>
    %20 = arith.addf %14, %19 : vector<16x32xf32>
    %21 = vector.extract_strided_slice %10 {offsets = [0, 1], sizes = [16, 1], strides = [1, 1]} : vector<16x32xf32> to vector<16x1xf32>
    %22 = vector.extract_strided_slice %11 {offsets = [1, 0], sizes = [1, 32], strides = [1, 1]} : vector<32x32xf32> to vector<1x32xf32>
    %23 = vector.broadcast %21 : vector<16x1xf32> to vector<16x32xf32>
    %24 = vector.broadcast %22 : vector<1x32xf32> to vector<16x32xf32>
    %25 = arith.mulf %23, %24 : vector<16x32xf32>
    %26 = arith.addf %20, %25 : vector<16x32xf32>
    %27 = vector.extract_strided_slice %10 {offsets = [0, 2], sizes = [16, 1], strides = [1, 1]} : vector<16x32xf32> to vector<16x1xf32>
    %28 = vector.extract_strided_slice %11 {offsets = [2, 0], sizes = [1, 32], strides = [1, 1]} : vector<32x32xf32> to vector<1x32xf32>
    %29 = vector.broadcast %27 : vector<16x1xf32> to vector<16x32xf32>
    %30 = vector.broadcast %28 : vector<1x32xf32> to vector<16x32xf32>
    %31 = arith.mulf %29, %30 : vector<16x32xf32>
    %32 = arith.addf %26, %31 : vector<16x32xf32>
    %33 = vector.extract_strided_slice %10 {offsets = [0, 3], sizes = [16, 1], strides = [1, 1]} : vector<16x32xf32> to vector<16x1xf32>
    %34 = vector.extract_strided_slice %11 {offsets = [3, 0], sizes = [1, 32], strides = [1, 1]} : vector<32x32xf32> to vector<1x32xf32>
    %35 = vector.broadcast %33 : vector<16x1xf32> to vector<16x32xf32>
    %36 = vector.broadcast %34 : vector<1x32xf32> to vector<16x32xf32>
    %37 = arith.mulf %35, %36 : vector<16x32xf32>
    %38 = arith.addf %32, %37 : vector<16x32xf32>
    %39 = vector.extract_strided_slice %10 {offsets = [0, 4], sizes = [16, 1], strides = [1, 1]} : vector<16x32xf32> to vector<16x1xf32>
    %40 = vector.extract_strided_slice %11 {offsets = [4, 0], sizes = [1, 32], strides = [1, 1]} : vector<32x32xf32> to vector<1x32xf32>
    %41 = vector.broadcast %39 : vector<16x1xf32> to vector<16x32xf32>
    %42 = vector.broadcast %40 : vector<1x32xf32> to vector<16x32xf32>
    %43 = arith.mulf %41, %42 : vector<16x32xf32>
    %44 = arith.addf %38, %43 : vector<16x32xf32>
    %45 = vector.extract_strided_slice %10 {offsets = [0, 5], sizes = [16, 1], strides = [1, 1]} : vector<16x32xf32> to vector<16x1xf32>
    %46 = vector.extract_strided_slice %11 {offsets = [5, 0], sizes = [1, 32], strides = [1, 1]} : vector<32x32xf32> to vector<1x32xf32>
    %47 = vector.broadcast %45 : vector<16x1xf32> to vector<16x32xf32>
    %48 = vector.broadcast %46 : vector<1x32xf32> to vector<16x32xf32>
    %49 = arith.mulf %47, %48 : vector<16x32xf32>
    %50 = arith.addf %44, %49 : vector<16x32xf32>
    %51 = vector.extract_strided_slice %10 {offsets = [0, 6], sizes = [16, 1], strides = [1, 1]} : vector<16x32xf32> to vector<16x1xf32>
    %52 = vector.extract_strided_slice %11 {offsets = [6, 0], sizes = [1, 32], strides = [1, 1]} : vector<32x32xf32> to vector<1x32xf32>
    %53 = vector.broadcast %51 : vector<16x1xf32> to vector<16x32xf32>
    %54 = vector.broadcast %52 : vector<1x32xf32> to vector<16x32xf32>
    %55 = arith.mulf %53, %54 : vector<16x32xf32>
    %56 = arith.addf %50, %55 : vector<16x32xf32>
    %57 = vector.extract_strided_slice %10 {offsets = [0, 7], sizes = [16, 1], strides = [1, 1]} : vector<16x32xf32> to vector<16x1xf32>
    %58 = vector.extract_strided_slice %11 {offsets = [7, 0], sizes = [1, 32], strides = [1, 1]} : vector<32x32xf32> to vector<1x32xf32>
    %59 = vector.broadcast %57 : vector<16x1xf32> to vector<16x32xf32>
    %60 = vector.broadcast %58 : vector<1x32xf32> to vector<16x32xf32>
    %61 = arith.mulf %59, %60 : vector<16x32xf32>
    %62 = arith.addf %56, %61 : vector<16x32xf32>
    %63 = vector.extract_strided_slice %10 {offsets = [0, 8], sizes = [16, 1], strides = [1, 1]} : vector<16x32xf32> to vector<16x1xf32>
    %64 = vector.extract_strided_slice %11 {offsets = [8, 0], sizes = [1, 32], strides = [1, 1]} : vector<32x32xf32> to vector<1x32xf32>
    %65 = vector.broadcast %63 : vector<16x1xf32> to vector<16x32xf32>
    %66 = vector.broadcast %64 : vector<1x32xf32> to vector<16x32xf32>
    %67 = arith.mulf %65, %66 : vector<16x32xf32>
    %68 = arith.addf %62, %67 : vector<16x32xf32>
    %69 = vector.extract_strided_slice %10 {offsets = [0, 9], sizes = [16, 1], strides = [1, 1]} : vector<16x32xf32> to vector<16x1xf32>
    %70 = vector.extract_strided_slice %11 {offsets = [9, 0], sizes = [1, 32], strides = [1, 1]} : vector<32x32xf32> to vector<1x32xf32>
    %71 = vector.broadcast %69 : vector<16x1xf32> to vector<16x32xf32>
    %72 = vector.broadcast %70 : vector<1x32xf32> to vector<16x32xf32>
    %73 = arith.mulf %71, %72 : vector<16x32xf32>
    %74 = arith.addf %68, %73 : vector<16x32xf32>
    %75 = vector.extract_strided_slice %10 {offsets = [0, 10], sizes = [16, 1], strides = [1, 1]} : vector<16x32xf32> to vector<16x1xf32>
    %76 = vector.extract_strided_slice %11 {offsets = [10, 0], sizes = [1, 32], strides = [1, 1]} : vector<32x32xf32> to vector<1x32xf32>
    %77 = vector.broadcast %75 : vector<16x1xf32> to vector<16x32xf32>
    %78 = vector.broadcast %76 : vector<1x32xf32> to vector<16x32xf32>
    %79 = arith.mulf %77, %78 : vector<16x32xf32>
    %80 = arith.addf %74, %79 : vector<16x32xf32>
    %81 = vector.extract_strided_slice %10 {offsets = [0, 11], sizes = [16, 1], strides = [1, 1]} : vector<16x32xf32> to vector<16x1xf32>
    %82 = vector.extract_strided_slice %11 {offsets = [11, 0], sizes = [1, 32], strides = [1, 1]} : vector<32x32xf32> to vector<1x32xf32>
    %83 = vector.broadcast %81 : vector<16x1xf32> to vector<16x32xf32>
    %84 = vector.broadcast %82 : vector<1x32xf32> to vector<16x32xf32>
    %85 = arith.mulf %83, %84 : vector<16x32xf32>
    %86 = arith.addf %80, %85 : vector<16x32xf32>
    %87 = vector.extract_strided_slice %10 {offsets = [0, 12], sizes = [16, 1], strides = [1, 1]} : vector<16x32xf32> to vector<16x1xf32>
    %88 = vector.extract_strided_slice %11 {offsets = [12, 0], sizes = [1, 32], strides = [1, 1]} : vector<32x32xf32> to vector<1x32xf32>
    %89 = vector.broadcast %87 : vector<16x1xf32> to vector<16x32xf32>
    %90 = vector.broadcast %88 : vector<1x32xf32> to vector<16x32xf32>
    %91 = arith.mulf %89, %90 : vector<16x32xf32>
    %92 = arith.addf %86, %91 : vector<16x32xf32>
    %93 = vector.extract_strided_slice %10 {offsets = [0, 13], sizes = [16, 1], strides = [1, 1]} : vector<16x32xf32> to vector<16x1xf32>
    %94 = vector.extract_strided_slice %11 {offsets = [13, 0], sizes = [1, 32], strides = [1, 1]} : vector<32x32xf32> to vector<1x32xf32>
    %95 = vector.broadcast %93 : vector<16x1xf32> to vector<16x32xf32>
    %96 = vector.broadcast %94 : vector<1x32xf32> to vector<16x32xf32>
    %97 = arith.mulf %95, %96 : vector<16x32xf32>
    %98 = arith.addf %92, %97 : vector<16x32xf32>
    %99 = vector.extract_strided_slice %10 {offsets = [0, 14], sizes = [16, 1], strides = [1, 1]} : vector<16x32xf32> to vector<16x1xf32>
    %100 = vector.extract_strided_slice %11 {offsets = [14, 0], sizes = [1, 32], strides = [1, 1]} : vector<32x32xf32> to vector<1x32xf32>
    %101 = vector.broadcast %99 : vector<16x1xf32> to vector<16x32xf32>
    %102 = vector.broadcast %100 : vector<1x32xf32> to vector<16x32xf32>
    %103 = arith.mulf %101, %102 : vector<16x32xf32>
    %104 = arith.addf %98, %103 : vector<16x32xf32>
    %105 = vector.extract_strided_slice %10 {offsets = [0, 15], sizes = [16, 1], strides = [1, 1]} : vector<16x32xf32> to vector<16x1xf32>
    %106 = vector.extract_strided_slice %11 {offsets = [15, 0], sizes = [1, 32], strides = [1, 1]} : vector<32x32xf32> to vector<1x32xf32>
    %107 = vector.broadcast %105 : vector<16x1xf32> to vector<16x32xf32>
    %108 = vector.broadcast %106 : vector<1x32xf32> to vector<16x32xf32>
    %109 = arith.mulf %107, %108 : vector<16x32xf32>
    %110 = arith.addf %104, %109 : vector<16x32xf32>
    %111 = vector.extract_strided_slice %10 {offsets = [0, 16], sizes = [16, 1], strides = [1, 1]} : vector<16x32xf32> to vector<16x1xf32>
    %112 = vector.extract_strided_slice %11 {offsets = [16, 0], sizes = [1, 32], strides = [1, 1]} : vector<32x32xf32> to vector<1x32xf32>
    %113 = vector.broadcast %111 : vector<16x1xf32> to vector<16x32xf32>
    %114 = vector.broadcast %112 : vector<1x32xf32> to vector<16x32xf32>
    %115 = arith.mulf %113, %114 : vector<16x32xf32>
    %116 = arith.addf %110, %115 : vector<16x32xf32>
    %117 = vector.extract_strided_slice %10 {offsets = [0, 17], sizes = [16, 1], strides = [1, 1]} : vector<16x32xf32> to vector<16x1xf32>
    %118 = vector.extract_strided_slice %11 {offsets = [17, 0], sizes = [1, 32], strides = [1, 1]} : vector<32x32xf32> to vector<1x32xf32>
    %119 = vector.broadcast %117 : vector<16x1xf32> to vector<16x32xf32>
    %120 = vector.broadcast %118 : vector<1x32xf32> to vector<16x32xf32>
    %121 = arith.mulf %119, %120 : vector<16x32xf32>
    %122 = arith.addf %116, %121 : vector<16x32xf32>
    %123 = vector.extract_strided_slice %10 {offsets = [0, 18], sizes = [16, 1], strides = [1, 1]} : vector<16x32xf32> to vector<16x1xf32>
    %124 = vector.extract_strided_slice %11 {offsets = [18, 0], sizes = [1, 32], strides = [1, 1]} : vector<32x32xf32> to vector<1x32xf32>
    %125 = vector.broadcast %123 : vector<16x1xf32> to vector<16x32xf32>
    %126 = vector.broadcast %124 : vector<1x32xf32> to vector<16x32xf32>
    %127 = arith.mulf %125, %126 : vector<16x32xf32>
    %128 = arith.addf %122, %127 : vector<16x32xf32>
    %129 = vector.extract_strided_slice %10 {offsets = [0, 19], sizes = [16, 1], strides = [1, 1]} : vector<16x32xf32> to vector<16x1xf32>
    %130 = vector.extract_strided_slice %11 {offsets = [19, 0], sizes = [1, 32], strides = [1, 1]} : vector<32x32xf32> to vector<1x32xf32>
    %131 = vector.broadcast %129 : vector<16x1xf32> to vector<16x32xf32>
    %132 = vector.broadcast %130 : vector<1x32xf32> to vector<16x32xf32>
    %133 = arith.mulf %131, %132 : vector<16x32xf32>
    %134 = arith.addf %128, %133 : vector<16x32xf32>
    %135 = vector.extract_strided_slice %10 {offsets = [0, 20], sizes = [16, 1], strides = [1, 1]} : vector<16x32xf32> to vector<16x1xf32>
    %136 = vector.extract_strided_slice %11 {offsets = [20, 0], sizes = [1, 32], strides = [1, 1]} : vector<32x32xf32> to vector<1x32xf32>
    %137 = vector.broadcast %135 : vector<16x1xf32> to vector<16x32xf32>
    %138 = vector.broadcast %136 : vector<1x32xf32> to vector<16x32xf32>
    %139 = arith.mulf %137, %138 : vector<16x32xf32>
    %140 = arith.addf %134, %139 : vector<16x32xf32>
    %141 = vector.extract_strided_slice %10 {offsets = [0, 21], sizes = [16, 1], strides = [1, 1]} : vector<16x32xf32> to vector<16x1xf32>
    %142 = vector.extract_strided_slice %11 {offsets = [21, 0], sizes = [1, 32], strides = [1, 1]} : vector<32x32xf32> to vector<1x32xf32>
    %143 = vector.broadcast %141 : vector<16x1xf32> to vector<16x32xf32>
    %144 = vector.broadcast %142 : vector<1x32xf32> to vector<16x32xf32>
    %145 = arith.mulf %143, %144 : vector<16x32xf32>
    %146 = arith.addf %140, %145 : vector<16x32xf32>
    %147 = vector.extract_strided_slice %10 {offsets = [0, 22], sizes = [16, 1], strides = [1, 1]} : vector<16x32xf32> to vector<16x1xf32>
    %148 = vector.extract_strided_slice %11 {offsets = [22, 0], sizes = [1, 32], strides = [1, 1]} : vector<32x32xf32> to vector<1x32xf32>
    %149 = vector.broadcast %147 : vector<16x1xf32> to vector<16x32xf32>
    %150 = vector.broadcast %148 : vector<1x32xf32> to vector<16x32xf32>
    %151 = arith.mulf %149, %150 : vector<16x32xf32>
    %152 = arith.addf %146, %151 : vector<16x32xf32>
    %153 = vector.extract_strided_slice %10 {offsets = [0, 23], sizes = [16, 1], strides = [1, 1]} : vector<16x32xf32> to vector<16x1xf32>
    %154 = vector.extract_strided_slice %11 {offsets = [23, 0], sizes = [1, 32], strides = [1, 1]} : vector<32x32xf32> to vector<1x32xf32>
    %155 = vector.broadcast %153 : vector<16x1xf32> to vector<16x32xf32>
    %156 = vector.broadcast %154 : vector<1x32xf32> to vector<16x32xf32>
    %157 = arith.mulf %155, %156 : vector<16x32xf32>
    %158 = arith.addf %152, %157 : vector<16x32xf32>
    %159 = vector.extract_strided_slice %10 {offsets = [0, 24], sizes = [16, 1], strides = [1, 1]} : vector<16x32xf32> to vector<16x1xf32>
    %160 = vector.extract_strided_slice %11 {offsets = [24, 0], sizes = [1, 32], strides = [1, 1]} : vector<32x32xf32> to vector<1x32xf32>
    %161 = vector.broadcast %159 : vector<16x1xf32> to vector<16x32xf32>
    %162 = vector.broadcast %160 : vector<1x32xf32> to vector<16x32xf32>
    %163 = arith.mulf %161, %162 : vector<16x32xf32>
    %164 = arith.addf %158, %163 : vector<16x32xf32>
    %165 = vector.extract_strided_slice %10 {offsets = [0, 25], sizes = [16, 1], strides = [1, 1]} : vector<16x32xf32> to vector<16x1xf32>
    %166 = vector.extract_strided_slice %11 {offsets = [25, 0], sizes = [1, 32], strides = [1, 1]} : vector<32x32xf32> to vector<1x32xf32>
    %167 = vector.broadcast %165 : vector<16x1xf32> to vector<16x32xf32>
    %168 = vector.broadcast %166 : vector<1x32xf32> to vector<16x32xf32>
    %169 = arith.mulf %167, %168 : vector<16x32xf32>
    %170 = arith.addf %164, %169 : vector<16x32xf32>
    %171 = vector.extract_strided_slice %10 {offsets = [0, 26], sizes = [16, 1], strides = [1, 1]} : vector<16x32xf32> to vector<16x1xf32>
    %172 = vector.extract_strided_slice %11 {offsets = [26, 0], sizes = [1, 32], strides = [1, 1]} : vector<32x32xf32> to vector<1x32xf32>
    %173 = vector.broadcast %171 : vector<16x1xf32> to vector<16x32xf32>
    %174 = vector.broadcast %172 : vector<1x32xf32> to vector<16x32xf32>
    %175 = arith.mulf %173, %174 : vector<16x32xf32>
    %176 = arith.addf %170, %175 : vector<16x32xf32>
    %177 = vector.extract_strided_slice %10 {offsets = [0, 27], sizes = [16, 1], strides = [1, 1]} : vector<16x32xf32> to vector<16x1xf32>
    %178 = vector.extract_strided_slice %11 {offsets = [27, 0], sizes = [1, 32], strides = [1, 1]} : vector<32x32xf32> to vector<1x32xf32>
    %179 = vector.broadcast %177 : vector<16x1xf32> to vector<16x32xf32>
    %180 = vector.broadcast %178 : vector<1x32xf32> to vector<16x32xf32>
    %181 = arith.mulf %179, %180 : vector<16x32xf32>
    %182 = arith.addf %176, %181 : vector<16x32xf32>
    %183 = vector.extract_strided_slice %10 {offsets = [0, 28], sizes = [16, 1], strides = [1, 1]} : vector<16x32xf32> to vector<16x1xf32>
    %184 = vector.extract_strided_slice %11 {offsets = [28, 0], sizes = [1, 32], strides = [1, 1]} : vector<32x32xf32> to vector<1x32xf32>
    %185 = vector.broadcast %183 : vector<16x1xf32> to vector<16x32xf32>
    %186 = vector.broadcast %184 : vector<1x32xf32> to vector<16x32xf32>
    %187 = arith.mulf %185, %186 : vector<16x32xf32>
    %188 = arith.addf %182, %187 : vector<16x32xf32>
    %189 = vector.extract_strided_slice %10 {offsets = [0, 29], sizes = [16, 1], strides = [1, 1]} : vector<16x32xf32> to vector<16x1xf32>
    %190 = vector.extract_strided_slice %11 {offsets = [29, 0], sizes = [1, 32], strides = [1, 1]} : vector<32x32xf32> to vector<1x32xf32>
    %191 = vector.broadcast %189 : vector<16x1xf32> to vector<16x32xf32>
    %192 = vector.broadcast %190 : vector<1x32xf32> to vector<16x32xf32>
    %193 = arith.mulf %191, %192 : vector<16x32xf32>
    %194 = arith.addf %188, %193 : vector<16x32xf32>
    %195 = vector.extract_strided_slice %10 {offsets = [0, 30], sizes = [16, 1], strides = [1, 1]} : vector<16x32xf32> to vector<16x1xf32>
    %196 = vector.extract_strided_slice %11 {offsets = [30, 0], sizes = [1, 32], strides = [1, 1]} : vector<32x32xf32> to vector<1x32xf32>
    %197 = vector.broadcast %195 : vector<16x1xf32> to vector<16x32xf32>
    %198 = vector.broadcast %196 : vector<1x32xf32> to vector<16x32xf32>
    %199 = arith.mulf %197, %198 : vector<16x32xf32>
    %200 = arith.addf %194, %199 : vector<16x32xf32>
    %201 = vector.extract_strided_slice %10 {offsets = [0, 31], sizes = [16, 1], strides = [1, 1]} : vector<16x32xf32> to vector<16x1xf32>
    %202 = vector.extract_strided_slice %11 {offsets = [31, 0], sizes = [1, 32], strides = [1, 1]} : vector<32x32xf32> to vector<1x32xf32>
    %203 = vector.broadcast %201 : vector<16x1xf32> to vector<16x32xf32>
    %204 = vector.broadcast %202 : vector<1x32xf32> to vector<16x32xf32>
    %205 = arith.mulf %203, %204 : vector<16x32xf32>
    %206 = arith.addf %200, %205 : vector<16x32xf32>
    %cst_9 = arith.constant 3.000000e+01 : f32
    %207 = vector.broadcast %cst_9 : f32 to vector<16x32xf32>
    %208 = arith.mulf %207, %206 : vector<16x32xf32>
    %209 = math.sin %208 : vector<16x32xf32>
    %c0_10 = arith.constant 0 : index
    %c0_11 = arith.constant 0 : index
    %210 = vector.load %arg6[%c0_10, %c0_11] : memref<32x32xf32, #tpu.memory_space<vmem>>, vector<32x32xf32>
    %c0_12 = arith.constant 0 : index
    %c0_13 = arith.constant 0 : index
    %211 = vector.load %arg7[%c0_12, %c0_13] : memref<1x32xf32, #tpu.memory_space<vmem>>, vector<1x32xf32>
    %212 = vector.shape_cast %211 : vector<1x32xf32> to vector<1x32xf32>
    %213 = vector.broadcast %212 : vector<1x32xf32> to vector<16x32xf32>
    %214 = vector.extract_strided_slice %209 {offsets = [0, 0], sizes = [16, 1], strides = [1, 1]} : vector<16x32xf32> to vector<16x1xf32>
    %215 = vector.extract_strided_slice %210 {offsets = [0, 0], sizes = [1, 32], strides = [1, 1]} : vector<32x32xf32> to vector<1x32xf32>
    %216 = vector.broadcast %214 : vector<16x1xf32> to vector<16x32xf32>
    %217 = vector.broadcast %215 : vector<1x32xf32> to vector<16x32xf32>
    %218 = arith.mulf %216, %217 : vector<16x32xf32>
    %219 = arith.addf %213, %218 : vector<16x32xf32>
    %220 = vector.extract_strided_slice %209 {offsets = [0, 1], sizes = [16, 1], strides = [1, 1]} : vector<16x32xf32> to vector<16x1xf32>
    %221 = vector.extract_strided_slice %210 {offsets = [1, 0], sizes = [1, 32], strides = [1, 1]} : vector<32x32xf32> to vector<1x32xf32>
    %222 = vector.broadcast %220 : vector<16x1xf32> to vector<16x32xf32>
    %223 = vector.broadcast %221 : vector<1x32xf32> to vector<16x32xf32>
    %224 = arith.mulf %222, %223 : vector<16x32xf32>
    %225 = arith.addf %219, %224 : vector<16x32xf32>
    %226 = vector.extract_strided_slice %209 {offsets = [0, 2], sizes = [16, 1], strides = [1, 1]} : vector<16x32xf32> to vector<16x1xf32>
    %227 = vector.extract_strided_slice %210 {offsets = [2, 0], sizes = [1, 32], strides = [1, 1]} : vector<32x32xf32> to vector<1x32xf32>
    %228 = vector.broadcast %226 : vector<16x1xf32> to vector<16x32xf32>
    %229 = vector.broadcast %227 : vector<1x32xf32> to vector<16x32xf32>
    %230 = arith.mulf %228, %229 : vector<16x32xf32>
    %231 = arith.addf %225, %230 : vector<16x32xf32>
    %232 = vector.extract_strided_slice %209 {offsets = [0, 3], sizes = [16, 1], strides = [1, 1]} : vector<16x32xf32> to vector<16x1xf32>
    %233 = vector.extract_strided_slice %210 {offsets = [3, 0], sizes = [1, 32], strides = [1, 1]} : vector<32x32xf32> to vector<1x32xf32>
    %234 = vector.broadcast %232 : vector<16x1xf32> to vector<16x32xf32>
    %235 = vector.broadcast %233 : vector<1x32xf32> to vector<16x32xf32>
    %236 = arith.mulf %234, %235 : vector<16x32xf32>
    %237 = arith.addf %231, %236 : vector<16x32xf32>
    %238 = vector.extract_strided_slice %209 {offsets = [0, 4], sizes = [16, 1], strides = [1, 1]} : vector<16x32xf32> to vector<16x1xf32>
    %239 = vector.extract_strided_slice %210 {offsets = [4, 0], sizes = [1, 32], strides = [1, 1]} : vector<32x32xf32> to vector<1x32xf32>
    %240 = vector.broadcast %238 : vector<16x1xf32> to vector<16x32xf32>
    %241 = vector.broadcast %239 : vector<1x32xf32> to vector<16x32xf32>
    %242 = arith.mulf %240, %241 : vector<16x32xf32>
    %243 = arith.addf %237, %242 : vector<16x32xf32>
    %244 = vector.extract_strided_slice %209 {offsets = [0, 5], sizes = [16, 1], strides = [1, 1]} : vector<16x32xf32> to vector<16x1xf32>
    %245 = vector.extract_strided_slice %210 {offsets = [5, 0], sizes = [1, 32], strides = [1, 1]} : vector<32x32xf32> to vector<1x32xf32>
    %246 = vector.broadcast %244 : vector<16x1xf32> to vector<16x32xf32>
    %247 = vector.broadcast %245 : vector<1x32xf32> to vector<16x32xf32>
    %248 = arith.mulf %246, %247 : vector<16x32xf32>
    %249 = arith.addf %243, %248 : vector<16x32xf32>
    %250 = vector.extract_strided_slice %209 {offsets = [0, 6], sizes = [16, 1], strides = [1, 1]} : vector<16x32xf32> to vector<16x1xf32>
    %251 = vector.extract_strided_slice %210 {offsets = [6, 0], sizes = [1, 32], strides = [1, 1]} : vector<32x32xf32> to vector<1x32xf32>
    %252 = vector.broadcast %250 : vector<16x1xf32> to vector<16x32xf32>
    %253 = vector.broadcast %251 : vector<1x32xf32> to vector<16x32xf32>
    %254 = arith.mulf %252, %253 : vector<16x32xf32>
    %255 = arith.addf %249, %254 : vector<16x32xf32>
    %256 = vector.extract_strided_slice %209 {offsets = [0, 7], sizes = [16, 1], strides = [1, 1]} : vector<16x32xf32> to vector<16x1xf32>
    %257 = vector.extract_strided_slice %210 {offsets = [7, 0], sizes = [1, 32], strides = [1, 1]} : vector<32x32xf32> to vector<1x32xf32>
    %258 = vector.broadcast %256 : vector<16x1xf32> to vector<16x32xf32>
    %259 = vector.broadcast %257 : vector<1x32xf32> to vector<16x32xf32>
    %260 = arith.mulf %258, %259 : vector<16x32xf32>
    %261 = arith.addf %255, %260 : vector<16x32xf32>
    %262 = vector.extract_strided_slice %209 {offsets = [0, 8], sizes = [16, 1], strides = [1, 1]} : vector<16x32xf32> to vector<16x1xf32>
    %263 = vector.extract_strided_slice %210 {offsets = [8, 0], sizes = [1, 32], strides = [1, 1]} : vector<32x32xf32> to vector<1x32xf32>
    %264 = vector.broadcast %262 : vector<16x1xf32> to vector<16x32xf32>
    %265 = vector.broadcast %263 : vector<1x32xf32> to vector<16x32xf32>
    %266 = arith.mulf %264, %265 : vector<16x32xf32>
    %267 = arith.addf %261, %266 : vector<16x32xf32>
    %268 = vector.extract_strided_slice %209 {offsets = [0, 9], sizes = [16, 1], strides = [1, 1]} : vector<16x32xf32> to vector<16x1xf32>
    %269 = vector.extract_strided_slice %210 {offsets = [9, 0], sizes = [1, 32], strides = [1, 1]} : vector<32x32xf32> to vector<1x32xf32>
    %270 = vector.broadcast %268 : vector<16x1xf32> to vector<16x32xf32>
    %271 = vector.broadcast %269 : vector<1x32xf32> to vector<16x32xf32>
    %272 = arith.mulf %270, %271 : vector<16x32xf32>
    %273 = arith.addf %267, %272 : vector<16x32xf32>
    %274 = vector.extract_strided_slice %209 {offsets = [0, 10], sizes = [16, 1], strides = [1, 1]} : vector<16x32xf32> to vector<16x1xf32>
    %275 = vector.extract_strided_slice %210 {offsets = [10, 0], sizes = [1, 32], strides = [1, 1]} : vector<32x32xf32> to vector<1x32xf32>
    %276 = vector.broadcast %274 : vector<16x1xf32> to vector<16x32xf32>
    %277 = vector.broadcast %275 : vector<1x32xf32> to vector<16x32xf32>
    %278 = arith.mulf %276, %277 : vector<16x32xf32>
    %279 = arith.addf %273, %278 : vector<16x32xf32>
    %280 = vector.extract_strided_slice %209 {offsets = [0, 11], sizes = [16, 1], strides = [1, 1]} : vector<16x32xf32> to vector<16x1xf32>
    %281 = vector.extract_strided_slice %210 {offsets = [11, 0], sizes = [1, 32], strides = [1, 1]} : vector<32x32xf32> to vector<1x32xf32>
    %282 = vector.broadcast %280 : vector<16x1xf32> to vector<16x32xf32>
    %283 = vector.broadcast %281 : vector<1x32xf32> to vector<16x32xf32>
    %284 = arith.mulf %282, %283 : vector<16x32xf32>
    %285 = arith.addf %279, %284 : vector<16x32xf32>
    %286 = vector.extract_strided_slice %209 {offsets = [0, 12], sizes = [16, 1], strides = [1, 1]} : vector<16x32xf32> to vector<16x1xf32>
    %287 = vector.extract_strided_slice %210 {offsets = [12, 0], sizes = [1, 32], strides = [1, 1]} : vector<32x32xf32> to vector<1x32xf32>
    %288 = vector.broadcast %286 : vector<16x1xf32> to vector<16x32xf32>
    %289 = vector.broadcast %287 : vector<1x32xf32> to vector<16x32xf32>
    %290 = arith.mulf %288, %289 : vector<16x32xf32>
    %291 = arith.addf %285, %290 : vector<16x32xf32>
    %292 = vector.extract_strided_slice %209 {offsets = [0, 13], sizes = [16, 1], strides = [1, 1]} : vector<16x32xf32> to vector<16x1xf32>
    %293 = vector.extract_strided_slice %210 {offsets = [13, 0], sizes = [1, 32], strides = [1, 1]} : vector<32x32xf32> to vector<1x32xf32>
    %294 = vector.broadcast %292 : vector<16x1xf32> to vector<16x32xf32>
    %295 = vector.broadcast %293 : vector<1x32xf32> to vector<16x32xf32>
    %296 = arith.mulf %294, %295 : vector<16x32xf32>
    %297 = arith.addf %291, %296 : vector<16x32xf32>
    %298 = vector.extract_strided_slice %209 {offsets = [0, 14], sizes = [16, 1], strides = [1, 1]} : vector<16x32xf32> to vector<16x1xf32>
    %299 = vector.extract_strided_slice %210 {offsets = [14, 0], sizes = [1, 32], strides = [1, 1]} : vector<32x32xf32> to vector<1x32xf32>
    %300 = vector.broadcast %298 : vector<16x1xf32> to vector<16x32xf32>
    %301 = vector.broadcast %299 : vector<1x32xf32> to vector<16x32xf32>
    %302 = arith.mulf %300, %301 : vector<16x32xf32>
    %303 = arith.addf %297, %302 : vector<16x32xf32>
    %304 = vector.extract_strided_slice %209 {offsets = [0, 15], sizes = [16, 1], strides = [1, 1]} : vector<16x32xf32> to vector<16x1xf32>
    %305 = vector.extract_strided_slice %210 {offsets = [15, 0], sizes = [1, 32], strides = [1, 1]} : vector<32x32xf32> to vector<1x32xf32>
    %306 = vector.broadcast %304 : vector<16x1xf32> to vector<16x32xf32>
    %307 = vector.broadcast %305 : vector<1x32xf32> to vector<16x32xf32>
    %308 = arith.mulf %306, %307 : vector<16x32xf32>
    %309 = arith.addf %303, %308 : vector<16x32xf32>
    %310 = vector.extract_strided_slice %209 {offsets = [0, 16], sizes = [16, 1], strides = [1, 1]} : vector<16x32xf32> to vector<16x1xf32>
    %311 = vector.extract_strided_slice %210 {offsets = [16, 0], sizes = [1, 32], strides = [1, 1]} : vector<32x32xf32> to vector<1x32xf32>
    %312 = vector.broadcast %310 : vector<16x1xf32> to vector<16x32xf32>
    %313 = vector.broadcast %311 : vector<1x32xf32> to vector<16x32xf32>
    %314 = arith.mulf %312, %313 : vector<16x32xf32>
    %315 = arith.addf %309, %314 : vector<16x32xf32>
    %316 = vector.extract_strided_slice %209 {offsets = [0, 17], sizes = [16, 1], strides = [1, 1]} : vector<16x32xf32> to vector<16x1xf32>
    %317 = vector.extract_strided_slice %210 {offsets = [17, 0], sizes = [1, 32], strides = [1, 1]} : vector<32x32xf32> to vector<1x32xf32>
    %318 = vector.broadcast %316 : vector<16x1xf32> to vector<16x32xf32>
    %319 = vector.broadcast %317 : vector<1x32xf32> to vector<16x32xf32>
    %320 = arith.mulf %318, %319 : vector<16x32xf32>
    %321 = arith.addf %315, %320 : vector<16x32xf32>
    %322 = vector.extract_strided_slice %209 {offsets = [0, 18], sizes = [16, 1], strides = [1, 1]} : vector<16x32xf32> to vector<16x1xf32>
    %323 = vector.extract_strided_slice %210 {offsets = [18, 0], sizes = [1, 32], strides = [1, 1]} : vector<32x32xf32> to vector<1x32xf32>
    %324 = vector.broadcast %322 : vector<16x1xf32> to vector<16x32xf32>
    %325 = vector.broadcast %323 : vector<1x32xf32> to vector<16x32xf32>
    %326 = arith.mulf %324, %325 : vector<16x32xf32>
    %327 = arith.addf %321, %326 : vector<16x32xf32>
    %328 = vector.extract_strided_slice %209 {offsets = [0, 19], sizes = [16, 1], strides = [1, 1]} : vector<16x32xf32> to vector<16x1xf32>
    %329 = vector.extract_strided_slice %210 {offsets = [19, 0], sizes = [1, 32], strides = [1, 1]} : vector<32x32xf32> to vector<1x32xf32>
    %330 = vector.broadcast %328 : vector<16x1xf32> to vector<16x32xf32>
    %331 = vector.broadcast %329 : vector<1x32xf32> to vector<16x32xf32>
    %332 = arith.mulf %330, %331 : vector<16x32xf32>
    %333 = arith.addf %327, %332 : vector<16x32xf32>
    %334 = vector.extract_strided_slice %209 {offsets = [0, 20], sizes = [16, 1], strides = [1, 1]} : vector<16x32xf32> to vector<16x1xf32>
    %335 = vector.extract_strided_slice %210 {offsets = [20, 0], sizes = [1, 32], strides = [1, 1]} : vector<32x32xf32> to vector<1x32xf32>
    %336 = vector.broadcast %334 : vector<16x1xf32> to vector<16x32xf32>
    %337 = vector.broadcast %335 : vector<1x32xf32> to vector<16x32xf32>
    %338 = arith.mulf %336, %337 : vector<16x32xf32>
    %339 = arith.addf %333, %338 : vector<16x32xf32>
    %340 = vector.extract_strided_slice %209 {offsets = [0, 21], sizes = [16, 1], strides = [1, 1]} : vector<16x32xf32> to vector<16x1xf32>
    %341 = vector.extract_strided_slice %210 {offsets = [21, 0], sizes = [1, 32], strides = [1, 1]} : vector<32x32xf32> to vector<1x32xf32>
    %342 = vector.broadcast %340 : vector<16x1xf32> to vector<16x32xf32>
    %343 = vector.broadcast %341 : vector<1x32xf32> to vector<16x32xf32>
    %344 = arith.mulf %342, %343 : vector<16x32xf32>
    %345 = arith.addf %339, %344 : vector<16x32xf32>
    %346 = vector.extract_strided_slice %209 {offsets = [0, 22], sizes = [16, 1], strides = [1, 1]} : vector<16x32xf32> to vector<16x1xf32>
    %347 = vector.extract_strided_slice %210 {offsets = [22, 0], sizes = [1, 32], strides = [1, 1]} : vector<32x32xf32> to vector<1x32xf32>
    %348 = vector.broadcast %346 : vector<16x1xf32> to vector<16x32xf32>
    %349 = vector.broadcast %347 : vector<1x32xf32> to vector<16x32xf32>
    %350 = arith.mulf %348, %349 : vector<16x32xf32>
    %351 = arith.addf %345, %350 : vector<16x32xf32>
    %352 = vector.extract_strided_slice %209 {offsets = [0, 23], sizes = [16, 1], strides = [1, 1]} : vector<16x32xf32> to vector<16x1xf32>
    %353 = vector.extract_strided_slice %210 {offsets = [23, 0], sizes = [1, 32], strides = [1, 1]} : vector<32x32xf32> to vector<1x32xf32>
    %354 = vector.broadcast %352 : vector<16x1xf32> to vector<16x32xf32>
    %355 = vector.broadcast %353 : vector<1x32xf32> to vector<16x32xf32>
    %356 = arith.mulf %354, %355 : vector<16x32xf32>
    %357 = arith.addf %351, %356 : vector<16x32xf32>
    %358 = vector.extract_strided_slice %209 {offsets = [0, 24], sizes = [16, 1], strides = [1, 1]} : vector<16x32xf32> to vector<16x1xf32>
    %359 = vector.extract_strided_slice %210 {offsets = [24, 0], sizes = [1, 32], strides = [1, 1]} : vector<32x32xf32> to vector<1x32xf32>
    %360 = vector.broadcast %358 : vector<16x1xf32> to vector<16x32xf32>
    %361 = vector.broadcast %359 : vector<1x32xf32> to vector<16x32xf32>
    %362 = arith.mulf %360, %361 : vector<16x32xf32>
    %363 = arith.addf %357, %362 : vector<16x32xf32>
    %364 = vector.extract_strided_slice %209 {offsets = [0, 25], sizes = [16, 1], strides = [1, 1]} : vector<16x32xf32> to vector<16x1xf32>
    %365 = vector.extract_strided_slice %210 {offsets = [25, 0], sizes = [1, 32], strides = [1, 1]} : vector<32x32xf32> to vector<1x32xf32>
    %366 = vector.broadcast %364 : vector<16x1xf32> to vector<16x32xf32>
    %367 = vector.broadcast %365 : vector<1x32xf32> to vector<16x32xf32>
    %368 = arith.mulf %366, %367 : vector<16x32xf32>
    %369 = arith.addf %363, %368 : vector<16x32xf32>
    %370 = vector.extract_strided_slice %209 {offsets = [0, 26], sizes = [16, 1], strides = [1, 1]} : vector<16x32xf32> to vector<16x1xf32>
    %371 = vector.extract_strided_slice %210 {offsets = [26, 0], sizes = [1, 32], strides = [1, 1]} : vector<32x32xf32> to vector<1x32xf32>
    %372 = vector.broadcast %370 : vector<16x1xf32> to vector<16x32xf32>
    %373 = vector.broadcast %371 : vector<1x32xf32> to vector<16x32xf32>
    %374 = arith.mulf %372, %373 : vector<16x32xf32>
    %375 = arith.addf %369, %374 : vector<16x32xf32>
    %376 = vector.extract_strided_slice %209 {offsets = [0, 27], sizes = [16, 1], strides = [1, 1]} : vector<16x32xf32> to vector<16x1xf32>
    %377 = vector.extract_strided_slice %210 {offsets = [27, 0], sizes = [1, 32], strides = [1, 1]} : vector<32x32xf32> to vector<1x32xf32>
    %378 = vector.broadcast %376 : vector<16x1xf32> to vector<16x32xf32>
    %379 = vector.broadcast %377 : vector<1x32xf32> to vector<16x32xf32>
    %380 = arith.mulf %378, %379 : vector<16x32xf32>
    %381 = arith.addf %375, %380 : vector<16x32xf32>
    %382 = vector.extract_strided_slice %209 {offsets = [0, 28], sizes = [16, 1], strides = [1, 1]} : vector<16x32xf32> to vector<16x1xf32>
    %383 = vector.extract_strided_slice %210 {offsets = [28, 0], sizes = [1, 32], strides = [1, 1]} : vector<32x32xf32> to vector<1x32xf32>
    %384 = vector.broadcast %382 : vector<16x1xf32> to vector<16x32xf32>
    %385 = vector.broadcast %383 : vector<1x32xf32> to vector<16x32xf32>
    %386 = arith.mulf %384, %385 : vector<16x32xf32>
    %387 = arith.addf %381, %386 : vector<16x32xf32>
    %388 = vector.extract_strided_slice %209 {offsets = [0, 29], sizes = [16, 1], strides = [1, 1]} : vector<16x32xf32> to vector<16x1xf32>
    %389 = vector.extract_strided_slice %210 {offsets = [29, 0], sizes = [1, 32], strides = [1, 1]} : vector<32x32xf32> to vector<1x32xf32>
    %390 = vector.broadcast %388 : vector<16x1xf32> to vector<16x32xf32>
    %391 = vector.broadcast %389 : vector<1x32xf32> to vector<16x32xf32>
    %392 = arith.mulf %390, %391 : vector<16x32xf32>
    %393 = arith.addf %387, %392 : vector<16x32xf32>
    %394 = vector.extract_strided_slice %209 {offsets = [0, 30], sizes = [16, 1], strides = [1, 1]} : vector<16x32xf32> to vector<16x1xf32>
    %395 = vector.extract_strided_slice %210 {offsets = [30, 0], sizes = [1, 32], strides = [1, 1]} : vector<32x32xf32> to vector<1x32xf32>
    %396 = vector.broadcast %394 : vector<16x1xf32> to vector<16x32xf32>
    %397 = vector.broadcast %395 : vector<1x32xf32> to vector<16x32xf32>
    %398 = arith.mulf %396, %397 : vector<16x32xf32>
    %399 = arith.addf %393, %398 : vector<16x32xf32>
    %400 = vector.extract_strided_slice %209 {offsets = [0, 31], sizes = [16, 1], strides = [1, 1]} : vector<16x32xf32> to vector<16x1xf32>
    %401 = vector.extract_strided_slice %210 {offsets = [31, 0], sizes = [1, 32], strides = [1, 1]} : vector<32x32xf32> to vector<1x32xf32>
    %402 = vector.broadcast %400 : vector<16x1xf32> to vector<16x32xf32>
    %403 = vector.broadcast %401 : vector<1x32xf32> to vector<16x32xf32>
    %404 = arith.mulf %402, %403 : vector<16x32xf32>
    %405 = arith.addf %399, %404 : vector<16x32xf32>
    %c0_14 = arith.constant 0 : index
    %c0_15 = arith.constant 0 : index
    %406 = vector.load %arg8[%c0_14, %c0_15] : memref<16x32xf32, #tpu.memory_space<vmem>>, vector<16x32xf32>
    tpu.vector_store %arg8[%c0_14, %c0_15], %405 {strides = array<i32>} : memref<16x32xf32, #tpu.memory_space<vmem>>, vector<16x32xf32>,
    return
  }
  func.func @transform_0(%arg0: i32) -> (i32, i32) {
    %c0_i32 = arith.constant 0 : i32
    %c0_i32_0 = arith.constant 0 : i32
    %c0_i32_1 = arith.constant 0 : i32
    return %c0_i32, %c0_i32_0 : i32, i32
  }
  func.func @transform_1(%arg0: i32) -> (i32, i32) {
    %c0_i32 = arith.constant 0 : i32
    %c0_i32_0 = arith.constant 0 : i32
    %c0_i32_1 = arith.constant 0 : i32
    return %c0_i32, %c0_i32_0 : i32, i32
  }
  func.func @transform_2(%arg0: i32) -> (i32, i32) {
    %c0_i32 = arith.constant 0 : i32
    %c0_i32_0 = arith.constant 0 : i32
    %c0_i32_1 = arith.constant 0 : i32
    return %c0_i32, %c0_i32_0 : i32, i32
  }
  func.func @transform_3(%arg0: i32) -> (i32, i32) {
    %c0_i32 = arith.constant 0 : i32
    %c0_i32_0 = arith.constant 0 : i32
    %c0_i32_1 = arith.constant 0 : i32
    return %c0_i32, %c0_i32_0 : i32, i32
  }
  func.func @transform_4(%arg0: i32) -> (i32, i32) {
    %c0_i32 = arith.constant 0 : i32
    %c0_i32_0 = arith.constant 0 : i32
    %c0_i32_1 = arith.constant 0 : i32
    return %c0_i32, %c0_i32_0 : i32, i32
  }
  func.func @transform_5(%arg0: i32) -> (i32, i32) {
    %c0_i32 = arith.constant 0 : i32
    %c0_i32_0 = arith.constant 0 : i32
    %c0_i32_1 = arith.constant 0 : i32
    return %c0_i32, %c0_i32_0 : i32, i32
  }
  func.func @transform_6(%arg0: i32) -> (i32, i32) {
    %c0_i32 = arith.constant 0 : i32
    %c0_i32_0 = arith.constant 0 : i32
    %c0_i32_1 = arith.constant 0 : i32
    return %c0_i32, %c0_i32_0 : i32, i32
  }
  func.func @transform_7(%arg0: i32) -> (i32, i32) {
    %c0_i32 = arith.constant 0 : i32
    %c0_i32_0 = arith.constant 0 : i32
    %c0_i32_1 = arith.constant 0 : i32
    return %c0_i32, %c0_i32_0 : i32, i32
  }
}

</mosaic_0001>

<llo_original>
// kernel: tpu_custom_call.1
$region0: #{tpu_custom_call.1}
  #allocation0 [shape = 'u32[]', space=smem, size = 0x4, offset = 0x4, fixed_abs, tag = 'smem constant byte address 0x4 - core index']
  #allocation1 [shape = 'u32[72,128]{1,0:T(1,128)}', space=vmem, size = 0x9000, scoped, tag = 'internal scratch']
  %s0 = inlined_call_operand.vmem [shape: f32[16,1], index: 0, kind: input, shape index: {}]
  %s1 = inlined_call_operand.vmem [shape: f32[1,32], index: 1, kind: input, shape index: {}]
  %s2 = inlined_call_operand.vmem [shape: f32[1,32], index: 2, kind: input, shape index: {}]
  %s3 = inlined_call_operand.hbm [shape: f32[32,32], index: 3, kind: input, shape index: {}]
  %s4 = inlined_call_operand.vmem [shape: f32[1,32], index: 4, kind: input, shape index: {}]
  %s5 = inlined_call_operand.hbm [shape: f32[32,32], index: 5, kind: input, shape index: {}]
  %s6 = inlined_call_operand.vmem [shape: f32[1,32], index: 6, kind: input, shape index: {}]
  %s7 = inlined_call_operand.hbm [shape: f32[16,32], index: 7, kind: output, shape index: {}]
  %s8 = sld [smem:[#allocation0]]
  $region46: #{tpu_custom_call.1} parent=0
    _
  %s10 = ssub.s32 1, %s8
  %s11 = scalar_select 0, %s10, %s8
  $region1: #{tpu_custom_call.1} parent=0
    #allocation2 [shape = 'u8[16384]{0}', space=vmem, size = 0x4000, scoped, tag = 'input window, operand 3, single buffered']
    #allocation3 [shape = 's32[1]{0}', space=sflag, size = 0x4, scoped, tag = 'scoped memory for tpu_custom_call.1']
    #allocation4 [shape = 's32[1]{0}', space=sflag, size = 0x4, scoped, tag = 'scoped memory for tpu_custom_call.1']
    #allocation5 [shape = 'u8[16384]{0}', space=vmem, size = 0x4000, scoped, tag = 'input window, operand 5, single buffered']
    #allocation6 [shape = 's32[1]{0}', space=sflag, size = 0x4, scoped, tag = 'scoped memory for tpu_custom_call.1']
    #allocation7 [shape = 'u8[8192]{0}', space=vmem, size = 0x2000, scoped, tag = 'output window, operand 0, single buffered']
    %12 = vsyncpa [#allocation3], 0
    %13 = vsyncpa [#allocation6], 0
    %14 = vsyncpa [#allocation4], 0
    // Predicated region
    $region2: #{tpu_custom_call.1} parent=1 // pred_check
      _
    $region3: #{tpu_custom_call.1} parent=1 // pred_check_branch
      %16 = sbr.rel (0) target = $region5
    $region4: #{tpu_custom_call.1} parent=1 // pred_region
      _
    $region5: #{tpu_custom_call.1} parent=1 // pred_fallthru
      _
    // Predicated region
    $region6: #{tpu_custom_call.1} parent=1 // pred_check
      _
    $region7: #{tpu_custom_call.1} parent=1 // pred_check_branch
      %18 = sbr.rel (0) target = $region9
    $region8: #{tpu_custom_call.1} parent=1 // pred_region
      _
    $region9: #{tpu_custom_call.1} parent=1 // pred_fallthru
      _
    // Predicated region
    $region10: #{tpu_custom_call.1} parent=1 // pred_check
      _
    $region11: #{tpu_custom_call.1} parent=1 // pred_check_branch
      %20 = sbr.rel (0) target = $region13
    $region12: #{tpu_custom_call.1} parent=1 // pred_region
      _
    $region13: #{tpu_custom_call.1} parent=1 // pred_fallthru
      _
    // Predicated region
    $region14: #{tpu_custom_call.1} parent=1 // pred_check
      _
    $region15: #{tpu_custom_call.1} parent=1 // pred_check_branch
      %22 = sbr.rel (0) target = $region17
    $region16: #{tpu_custom_call.1} parent=1 // pred_region
      %24 = vsyncadd [#allocation3], 0
      %s25 = sshll.u32 %s3, 4
      %s26 = int_to_ptr.hbm [resolvable:$true] %s25
      %s27 = sshll.u32 [#allocation2], 4
      %s28 = int_to_ptr.vmem [resolvable:$true] %s27
      %33 = dma.hbm_to_vmem [thread:$0]  %s26, 512, %s28, [#allocation3], 128, 128, 8
    $region17: #{tpu_custom_call.1} parent=1 // pred_fallthru
      _
    // Predicated region
    $region18: #{tpu_custom_call.1} parent=1 // pred_check
      _
    $region19: #{tpu_custom_call.1} parent=1 // pred_check_branch
      %35 = sbr.rel (0) target = $region21
    $region20: #{tpu_custom_call.1} parent=1 // pred_region
      _
    $region21: #{tpu_custom_call.1} parent=1 // pred_fallthru
      _
    // Predicated region
    $region22: #{tpu_custom_call.1} parent=1 // pred_check
      _
    $region23: #{tpu_custom_call.1} parent=1 // pred_check_branch
      %37 = sbr.rel (0) target = $region25
    $region24: #{tpu_custom_call.1} parent=1 // pred_region
      %39 = vsyncadd [#allocation6], 0
      %s40 = sshll.u32 %s5, 4
      %s41 = int_to_ptr.hbm [resolvable:$true] %s40
      %s42 = sshll.u32 [#allocation5], 4
      %s43 = int_to_ptr.vmem [resolvable:$true] %s42
      %48 = dma.hbm_to_vmem [thread:$0]  %s41, 512, %s43, [#allocation6], 128, 128, 8
    $region25: #{tpu_custom_call.1} parent=1 // pred_fallthru
      _
    // Predicated region
    $region26: #{tpu_custom_call.1} parent=1 // pred_check
      _
    $region27: #{tpu_custom_call.1} parent=1 // pred_check_branch
      %50 = sbr.rel (0) target = $region29
    $region28: #{tpu_custom_call.1} parent=1 // pred_region
      _
    $region29: #{tpu_custom_call.1} parent=1 // pred_fallthru
      _
    // Predicated region
    $region30: #{tpu_custom_call.1} parent=1 // pred_check
      _
    $region31: #{tpu_custom_call.1} parent=1 // pred_check_branch
      %52 = sbr.rel (0) target = $region33
    $region32: #{tpu_custom_call.1} parent=1 // pred_region
      %54 = dma.done [#allocation3], 512
    $region33: #{tpu_custom_call.1} parent=1 // pred_fallthru
      _
    // Predicated region
    $region34: #{tpu_custom_call.1} parent=1 // pred_check
      _
    $region35: #{tpu_custom_call.1} parent=1 // pred_check_branch
      %56 = sbr.rel (0) target = $region37
    $region36: #{tpu_custom_call.1} parent=1 // pred_region
      %58 = dma.done [#allocation6], 512
    $region37: #{tpu_custom_call.1} parent=1 // pred_fallthru
      _
    %v59 = vld [vmem:[%s0] sm:$0xff]
    %v60 = vld [vmem:[%s0 + $0x8] sm:$0xff]
    %v61 = vld [vmem:[%s1] sm:$0x1]
    %63 = vset.pattern.permute.xlu0 0
    %64 = vperm.xlu0 %63, %v59
    %v65 = vpop.permute.xlu0 %64
    %68 = vset.pattern.permute.xlu0 0
    %69 = vperm.xlu0 %68, %v60
    %v70 = vpop.permute.xlu0 %69
    %v73 = vperm.slane %v61, 0
    %v75 = vmul.f32 %v65, %v73
    %v76 = vmul.f32 %v70, %v73
    %v77 = vld [vmem:[%s2] sm:$0x1]
    %v79 = vperm.slane %v77, 0
    %v81 = vadd.f32 %v75, %v79
    %v82 = vadd.f32 %v76, %v79
    %v83 = vmul.f32 %v81, 30.0
    %v84 = vmul.f32 %v82, 30.0
    %v85 = vand.u32 2147483647, %v83
    %vm86 = vcmp.le.f32.partialorder %v85, 0.7853982
    %vm87 = vcmp.lt.s32.totalorder %v83, 0
    %v88 = vand.u32 %v83, 2139095040
    %v89 = vshrl.u32 %v88, 23
    %v90 = vsub.s32 %v89, 127
    %v91 = vand.u32 2147483647, %v83
    %v92 = vand.u32 %v91, 8388607
    %v93 = vor.u32 %v92, 8388608
    %v94 = vsub.s32 0, %v93
    %v95 = vadd.s32 %v90, 1
    %vm96 = vcmp.gt.s32.totalorder %v95, 0
    %v97 = vsel %vm96, %v95, 0
    %v98 = vshrl.u32 %v97, 5
    %v99 = vand.u32 %v97, 31
    %v100 = vsub.s32 32, %v99
    %v101 = vshrl.u32 683565275, %v100
    %v102 = vshll.u32 683565275, %v99
    %v103 = vshrl.u32 2475754826, %v100
    %v104 = vor.u32 %v102, %v103
    %v105 = vshll.u32 2475754826, %v99
    %v106 = vshrl.u32 2131351028, %v100
    %v107 = vor.u32 %v105, %v106
    %v108 = vshll.u32 2131351028, %v99
    %v109 = vshrl.u32 2102212464, %v100
    %v110 = vor.u32 %v108, %v109
    %v111 = vshll.u32 2102212464, %v99
    %v112 = vshrl.u32 920167782, %v100
    %v113 = vor.u32 %v111, %v112
    %v114 = vshll.u32 920167782, %v99
    %v115 = vshrl.u32 1326507024, %v100
    %v116 = vor.u32 %v114, %v115
    %vm117 = vcmp.lt.s32.totalorder %v98, 1
    %vm118 = vcmp.lt.s32.totalorder %v98, 2
    %vm119 = vcmp.lt.s32.totalorder %v98, 3
    %vm120 = vcmp.lt.s32.totalorder %v98, 4
    %v121 = vsel %vm117, %v101, %v104
    %v122 = vsel %vm120, %v110, 2102212464
    %v123 = vsel %vm119, %v107, %v122
    %v124 = vsel %vm118, %v121, %v123
    %v125 = vsel %vm117, %v104, %v107
    %v126 = vsel %vm120, %v113, 920167782
    %v127 = vsel %vm119, %v110, %v126
    %v128 = vsel %vm118, %v125, %v127
    %v129 = vsel %vm117, %v107, %v110
    %v130 = vsel %vm120, %v116, 1326507024
    %v131 = vsel %vm119, %v113, %v130
    %v132 = vsel %vm118, %v129, %v131
    %v133 = vshll.u32 %v93, 8
    %v134 = vand.u32 %v133, 65535
    %v135 = vshrl.u32 %v133, 16
    %v136 = vand.u32 %v132, 65535
    %v137 = vshrl.u32 %v132, 16
    %v138 = vmul.u32 %v134, %v136
    %v139 = vmul.u32 %v134, %v137
    %v140 = vmul.u32 %v135, %v136
    %v141 = vmul.u32 %v135, %v137
    %v142 = vshll.u32 %v139, 16
    %v143 = vshrl.u32 %v139, 16
    %v144 = vshll.u32 %v140, 16
    %v145 = vshrl.u32 %v140, 16
    %vm146 = vc.u32 %v138, %v142
    %v147 = vsel %vm146, 1, 0
    %v148 = vadd.s32 %v138, %v142
    %v149 = vadd.s32 %v141, %v147
    %vm150 = vc.u32 %v148, %v144
    %v151 = vsel %vm150, 1, 0
    %v152 = vadd.s32 %v148, %v144
    %v153 = vadd.s32 %v149, %v151
    %v154 = vadd.s32 %v153, %v143
    %v155 = vadd.s32 %v154, %v145
    %v156 = vand.u32 %v133, 65535
    %v157 = vshrl.u32 %v133, 16
    %v158 = vand.u32 %v128, 65535
    %v159 = vshrl.u32 %v128, 16
    %v160 = vmul.u32 %v156, %v158
    %v161 = vmul.u32 %v156, %v159
    %v162 = vmul.u32 %v157, %v158
    %v163 = vmul.u32 %v157, %v159
    %v164 = vshll.u32 %v161, 16
    %v165 = vshrl.u32 %v161, 16
    %v166 = vshll.u32 %v162, 16
    %v167 = vshrl.u32 %v162, 16
    %vm168 = vc.u32 %v160, %v164
    %v169 = vsel %vm168, 1, 0
    %v170 = vadd.s32 %v160, %v164
    %v171 = vadd.s32 %v163, %v169
    %vm172 = vc.u32 %v170, %v166
    %v173 = vsel %vm172, 1, 0
    %v174 = vadd.s32 %v170, %v166
    %v175 = vadd.s32 %v171, %v173
    %v176 = vadd.s32 %v175, %v165
    %v177 = vadd.s32 %v176, %v167
    %v178 = vmul.u32 %v133, %v124
    %v179 = vadd.s32 %v155, %v174
    %vm180 = vc.u32 %v155, %v174
    %v181 = vadd.s32 %v177, 1
    %v182 = vsel %vm180, %v181, %v177
    %v183 = vadd.s32 %v178, %v182
    %v184 = vadd.s32 %v183, 536870912
    %v185 = vshrl.u32 %v184, 30
    %v186 = vshll.u32 %v185, 30
    %v187 = vsub.s32 %v183, %v186
    %vm188 = vcmp.lt.s32.totalorder %v187, 0
    %v189 = vsub.s32 0, %v187
    %v190 = vsel %vm188, %v189, %v187
    %v191 = vclz %v190
    %v192 = vsub.s32 %v191, 2
    %vm193 = vcmp.gt.s32.totalorder 0, %v192
    %v194 = vsel %vm193, 0, %v192
    %v195 = vsub.s32 32, %v194
    %v196 = vshll.u32 %v187, %v194
    %v197 = vshrl.u32 %v179, %v195
    %v198 = vor.u32 %v196, %v197
    %v199 = vsub.s32 4294967266, %v194
    %v200 = vadd.s32 %v199, 127
    %v201 = vshll.u32 %v200, 23
    %v202 = vor.u32 4788187, %v201
    %v203 = vand.u32 2147483647, %v202
    %v205 = vcvt.s32.f32 %v198
    %v206 = vmul.f32 %v205, %v203
    %v207 = vxor.u32 %v206, 2147483648
    %v208 = vsel %vm87, %v207, %v206
    %v209 = vsub.s32 4, %v185
    %v210 = vsel %vm87, %v209, %v185
    %v211 = vsel %vm86, %v83, %v208
    %v212 = vsel %vm86, 0, %v210
    %v213 = vmul.f32 %v211, %v211
    %v214 = vmul.f32 %v213, -0.001358992
    %v215 = vadd.f32 %v214, 0.041655596
    %v216 = vmul.f32 %v213, %v215
    %v217 = vadd.f32 %v216, -0.4999988
    %v218 = vmul.f32 %v213, %v217
    %v219 = vadd.f32 1.0, %v218
    %v220 = vmul.f32 %v211, %v211
    %v221 = vmul.f32 %v220, -0.00019511016
    %v222 = vadd.f32 %v221, 0.008332121
    %v223 = vmul.f32 %v220, %v222
    %v224 = vadd.f32 %v223, -0.16666654
    %v225 = vmul.f32 %v220, %v224
    %v226 = vadd.f32 %v225, 1.0
    %v227 = vmul.f32 %v226, %v211
    %vm228 = vweird.f32 %v83
    %v229 = vadd.s32 %v212, 3
    %v230 = vand.u32 %v229, 3
    %vm231 = vcmp.lt.s32.totalorder %v230, 2
    %vm232 = vcmp.eq.s32.totalorder %v230, 0
    %v233 = vxor.u32 %v227, 2147483648
    %v234 = vsel %vm232, %v219, %v233
    %vm235 = vcmp.eq.s32.totalorder %v230, 2
    %v236 = vxor.u32 %v219, 2147483648
    %v237 = vsel %vm235, %v236, %v227
    %v238 = vsel %vm231, %v234, %v237
    %v239 = vsel %vm228, nan, %v238
    %v240 = vand.u32 2147483647, %v84
    %vm241 = vcmp.le.f32.partialorder %v240, 0.7853982
    %vm242 = vcmp.lt.s32.totalorder %v84, 0
    %v243 = vand.u32 %v84, 2139095040
    %v244 = vshrl.u32 %v243, 23
    %v245 = vsub.s32 %v244, 127
    %v246 = vand.u32 2147483647, %v84
    %v247 = vand.u32 %v246, 8388607
    %v248 = vor.u32 %v247, 8388608
    %v249 = vsub.s32 0, %v248
    %v250 = vadd.s32 %v245, 1
    %vm251 = vcmp.gt.s32.totalorder %v250, 0
    %v252 = vsel %vm251, %v250, 0
    %v253 = vshrl.u32 %v252, 5
    %v254 = vand.u32 %v252, 31
    %v255 = vsub.s32 32, %v254
    %v256 = vshrl.u32 683565275, %v255
    %v257 = vshll.u32 683565275, %v254
    %v258 = vshrl.u32 2475754826, %v255
    %v259 = vor.u32 %v257, %v258
    %v260 = vshll.u32 2475754826, %v254
    %v261 = vshrl.u32 2131351028, %v255
    %v262 = vor.u32 %v260, %v261
    %v263 = vshll.u32 2131351028, %v254
    %v264 = vshrl.u32 2102212464, %v255
    %v265 = vor.u32 %v263, %v264
    %v266 = vshll.u32 2102212464, %v254
    %v267 = vshrl.u32 920167782, %v255
    %v268 = vor.u32 %v266, %v267
    %v269 = vshll.u32 920167782, %v254
    %v270 = vshrl.u32 1326507024, %v255
    %v271 = vor.u32 %v269, %v270
    %vm272 = vcmp.lt.s32.totalorder %v253, 1
    %vm273 = vcmp.lt.s32.totalorder %v253, 2
    %vm274 = vcmp.lt.s32.totalorder %v253, 3
    %vm275 = vcmp.lt.s32.totalorder %v253, 4
    %v276 = vsel %vm272, %v256, %v259
    %v277 = vsel %vm275, %v265, 2102212464
    %v278 = vsel %vm274, %v262, %v277
    %v279 = vsel %vm273, %v276, %v278
    %v280 = vsel %vm272, %v259, %v262
    %v281 = vsel %vm275, %v268, 920167782
    %v282 = vsel %vm274, %v265, %v281
    %v283 = vsel %vm273, %v280, %v282
    %v284 = vsel %vm272, %v262, %v265
    %v285 = vsel %vm275, %v271, 1326507024
    %v286 = vsel %vm274, %v268, %v285
    %v287 = vsel %vm273, %v284, %v286
    %v288 = vshll.u32 %v248, 8
    %v289 = vand.u32 %v288, 65535
    %v290 = vshrl.u32 %v288, 16
    %v291 = vand.u32 %v287, 65535
    %v292 = vshrl.u32 %v287, 16
    %v293 = vmul.u32 %v289, %v291
    %v294 = vmul.u32 %v289, %v292
    %v295 = vmul.u32 %v290, %v291
    %v296 = vmul.u32 %v290, %v292
    %v297 = vshll.u32 %v294, 16
    %v298 = vshrl.u32 %v294, 16
    %v299 = vshll.u32 %v295, 16
    %v300 = vshrl.u32 %v295, 16
    %vm301 = vc.u32 %v293, %v297
    %v302 = vsel %vm301, 1, 0
    %v303 = vadd.s32 %v293, %v297
    %v304 = vadd.s32 %v296, %v302
    %vm305 = vc.u32 %v303, %v299
    %v306 = vsel %vm305, 1, 0
    %v307 = vadd.s32 %v303, %v299
    %v308 = vadd.s32 %v304, %v306
    %v309 = vadd.s32 %v308, %v298
    %v310 = vadd.s32 %v309, %v300
    %v311 = vand.u32 %v288, 65535
    %v312 = vshrl.u32 %v288, 16
    %v313 = vand.u32 %v283, 65535
    %v314 = vshrl.u32 %v283, 16
    %v315 = vmul.u32 %v311, %v313
    %v316 = vmul.u32 %v311, %v314
    %v317 = vmul.u32 %v312, %v313
    %v318 = vmul.u32 %v312, %v314
    %v319 = vshll.u32 %v316, 16
    %v320 = vshrl.u32 %v316, 16
    %v321 = vshll.u32 %v317, 16
    %v322 = vshrl.u32 %v317, 16
    %vm323 = vc.u32 %v315, %v319
    %v324 = vsel %vm323, 1, 0
    %v325 = vadd.s32 %v315, %v319
    %v326 = vadd.s32 %v318, %v324
    %vm327 = vc.u32 %v325, %v321
    %v328 = vsel %vm327, 1, 0
    %v329 = vadd.s32 %v325, %v321
    %v330 = vadd.s32 %v326, %v328
    %v331 = vadd.s32 %v330, %v320
    %v332 = vadd.s32 %v331, %v322
    %v333 = vmul.u32 %v288, %v279
    %v334 = vadd.s32 %v310, %v329
    %vm335 = vc.u32 %v310, %v329
    %v336 = vadd.s32 %v332, 1
    %v337 = vsel %vm335, %v336, %v332
    %v338 = vadd.s32 %v333, %v337
    %v339 = vadd.s32 %v338, 536870912
    %v340 = vshrl.u32 %v339, 30
    %v341 = vshll.u32 %v340, 30
    %v342 = vsub.s32 %v338, %v341
    %vm343 = vcmp.lt.s32.totalorder %v342, 0
    %v344 = vsub.s32 0, %v342
    %v345 = vsel %vm343, %v344, %v342
    %v346 = vclz %v345
    %v347 = vsub.s32 %v346, 2
    %vm348 = vcmp.gt.s32.totalorder 0, %v347
    %v349 = vsel %vm348, 0, %v347
    %v350 = vsub.s32 32, %v349
    %v351 = vshll.u32 %v342, %v349
    %v352 = vshrl.u32 %v334, %v350
    %v353 = vor.u32 %v351, %v352
    %v354 = vsub.s32 4294967266, %v349
    %v355 = vadd.s32 %v354, 127
    %v356 = vshll.u32 %v355, 23
    %v357 = vor.u32 4788187, %v356
    %v358 = vand.u32 2147483647, %v357
    %v360 = vcvt.s32.f32 %v353
    %v361 = vmul.f32 %v360, %v358
    %v362 = vxor.u32 %v361, 2147483648
    %v363 = vsel %vm242, %v362, %v361
    %v364 = vsub.s32 4, %v340
    %v365 = vsel %vm242, %v364, %v340
    %v366 = vsel %vm241, %v84, %v363
    %v367 = vsel %vm241, 0, %v365
    %v368 = vmul.f32 %v366, %v366
    %v369 = vmul.f32 %v368, -0.001358992
    %v370 = vadd.f32 %v369, 0.041655596
    %v371 = vmul.f32 %v368, %v370
    %v372 = vadd.f32 %v371, -0.4999988
    %v373 = vmul.f32 %v368, %v372
    %v374 = vadd.f32 1.0, %v373
    %v375 = vmul.f32 %v366, %v366
    %v376 = vmul.f32 %v375, -0.00019511016
    %v377 = vadd.f32 %v376, 0.008332121
    %v378 = vmul.f32 %v375, %v377
    %v379 = vadd.f32 %v378, -0.16666654
    %v380 = vmul.f32 %v375, %v379
    %v381 = vadd.f32 %v380, 1.0
    %v382 = vmul.f32 %v381, %v366
    %vm383 = vweird.f32 %v84
    %v384 = vadd.s32 %v367, 3
    %v385 = vand.u32 %v384, 3
    %vm386 = vcmp.lt.s32.totalorder %v385, 2
    %vm387 = vcmp.eq.s32.totalorder %v385, 0
    %v388 = vxor.u32 %v382, 2147483648
    %v389 = vsel %vm387, %v374, %v388
    %vm390 = vcmp.eq.s32.totalorder %v385, 2
    %v391 = vxor.u32 %v374, 2147483648
    %v392 = vsel %vm390, %v391, %v382
    %v393 = vsel %vm386, %v389, %v392
    %v394 = vsel %vm383, nan, %v393
    %v395 = vld [vmem:[#allocation2] sm:$0xff]
    %v396 = vld [vmem:[#allocation2 + $0x8] sm:$0xff]
    %v397 = vld [vmem:[#allocation2 + $0x10] sm:$0xff]
    %v398 = vld [vmem:[#allocation2 + $0x18] sm:$0xff]
    %v399 = vld [vmem:[%s4] sm:$0x1]
    %v401 = vperm.slane %v399, 0
    %404 = vset.pattern.permute.xlu0 0
    %405 = vperm.xlu0 %404, %v239
    %v406 = vpop.permute.xlu0 %405
    %409 = vset.pattern.permute.xlu0 0
    %410 = vperm.xlu0 %409, %v394
    %v411 = vpop.permute.xlu0 %410
    %v413 = vperm.slane %v395, 0
    %v414 = vmul.f32 %v406, %v413
    %v415 = vmul.f32 %v411, %v413
    %v416 = vadd.f32 %v401, %v414
    %v417 = vadd.f32 %v401, %v415
    %418 = vset.pattern.permute.xlu0 1
    %419 = vperm.xlu0 %418, %v239
    %v420 = vpop.permute.xlu0 %419
    %422 = vset.pattern.permute.xlu0 1
    %423 = vperm.xlu0 %422, %v394
    %v424 = vpop.permute.xlu0 %423
    %v426 = vperm.slane %v395, 1
    %v427 = vmul.f32 %v420, %v426
    %v428 = vmul.f32 %v424, %v426
    %v429 = vadd.f32 %v416, %v427
    %v430 = vadd.f32 %v417, %v428
    %431 = vset.pattern.permute.xlu0 2
    %432 = vperm.xlu0 %431, %v239
    %v433 = vpop.permute.xlu0 %432
    %435 = vset.pattern.permute.xlu0 2
    %436 = vperm.xlu0 %435, %v394
    %v437 = vpop.permute.xlu0 %436
    %v439 = vperm.slane %v395, 2
    %v440 = vmul.f32 %v433, %v439
    %v441 = vmul.f32 %v437, %v439
    %v442 = vadd.f32 %v429, %v440
    %v443 = vadd.f32 %v430, %v441
    %444 = vset.pattern.permute.xlu0 3
    %445 = vperm.xlu0 %444, %v239
    %v446 = vpop.permute.xlu0 %445
    %448 = vset.pattern.permute.xlu0 3
    %449 = vperm.xlu0 %448, %v394
    %v450 = vpop.permute.xlu0 %449
    %v452 = vperm.slane %v395, 3
    %v453 = vmul.f32 %v446, %v452
    %v454 = vmul.f32 %v450, %v452
    %v455 = vadd.f32 %v442, %v453
    %v456 = vadd.f32 %v443, %v454
    %457 = vset.pattern.permute.xlu0 4
    %458 = vperm.xlu0 %457, %v239
    %v459 = vpop.permute.xlu0 %458
    %461 = vset.pattern.permute.xlu0 4
    %462 = vperm.xlu0 %461, %v394
    %v463 = vpop.permute.xlu0 %462
    %v465 = vperm.slane %v395, 4
    %v466 = vmul.f32 %v459, %v465
    %v467 = vmul.f32 %v463, %v465
    %v468 = vadd.f32 %v455, %v466
    %v469 = vadd.f32 %v456, %v467
    %470 = vset.pattern.permute.xlu0 5
    %471 = vperm.xlu0 %470, %v239
    %v472 = vpop.permute.xlu0 %471
    %474 = vset.pattern.permute.xlu0 5
    %475 = vperm.xlu0 %474, %v394
    %v476 = vpop.permute.xlu0 %475
    %v478 = vperm.slane %v395, 5
    %v479 = vmul.f32 %v472, %v478
    %v480 = vmul.f32 %v476, %v478
    %v481 = vadd.f32 %v468, %v479
    %v482 = vadd.f32 %v469, %v480
    %483 = vset.pattern.permute.xlu0 6
    %484 = vperm.xlu0 %483, %v239
    %v485 = vpop.permute.xlu0 %484
    %487 = vset.pattern.permute.xlu0 6
    %488 = vperm.xlu0 %487, %v394
    %v489 = vpop.permute.xlu0 %488
    %v491 = vperm.slane %v395, 6
    %v492 = vmul.f32 %v485, %v491
    %v493 = vmul.f32 %v489, %v491
    %v494 = vadd.f32 %v481, %v492
    %v495 = vadd.f32 %v482, %v493
    %496 = vset.pattern.permute.xlu0 7
    %497 = vperm.xlu0 %496, %v239
    %v498 = vpop.permute.xlu0 %497
    %500 = vset.pattern.permute.xlu0 7
    %501 = vperm.xlu0 %500, %v394
    %v502 = vpop.permute.xlu0 %501
    %v504 = vperm.slane %v395, 7
    %v505 = vmul.f32 %v498, %v504
    %v506 = vmul.f32 %v502, %v504
    %v507 = vadd.f32 %v494, %v505
    %v508 = vadd.f32 %v495, %v506
    %509 = vset.pattern.permute.xlu0 8
    %510 = vperm.xlu0 %509, %v239
    %v511 = vpop.permute.xlu0 %510
    %513 = vset.pattern.permute.xlu0 8
    %514 = vperm.xlu0 %513, %v394
    %v515 = vpop.permute.xlu0 %514
    %v517 = vperm.slane %v396, 0
    %v518 = vmul.f32 %v511, %v517
    %v519 = vmul.f32 %v515, %v517
    %v520 = vadd.f32 %v507, %v518
    %v521 = vadd.f32 %v508, %v519
    %522 = vset.pattern.permute.xlu0 9
    %523 = vperm.xlu0 %522, %v239
    %v524 = vpop.permute.xlu0 %523
    %526 = vset.pattern.permute.xlu0 9
    %527 = vperm.xlu0 %526, %v394
    %v528 = vpop.permute.xlu0 %527
    %v530 = vperm.slane %v396, 1
    %v531 = vmul.f32 %v524, %v530
    %v532 = vmul.f32 %v528, %v530
    %v533 = vadd.f32 %v520, %v531
    %v534 = vadd.f32 %v521, %v532
    %535 = vset.pattern.permute.xlu0 10
    %536 = vperm.xlu0 %535, %v239
    %v537 = vpop.permute.xlu0 %536
    %539 = vset.pattern.permute.xlu0 10
    %540 = vperm.xlu0 %539, %v394
    %v541 = vpop.permute.xlu0 %540
    %v543 = vperm.slane %v396, 2
    %v544 = vmul.f32 %v537, %v543
    %v545 = vmul.f32 %v541, %v543
    %v546 = vadd.f32 %v533, %v544
    %v547 = vadd.f32 %v534, %v545
    %548 = vset.pattern.permute.xlu0 11
    %549 = vperm.xlu0 %548, %v239
    %v550 = vpop.permute.xlu0 %549
    %552 = vset.pattern.permute.xlu0 11
    %553 = vperm.xlu0 %552, %v394
    %v554 = vpop.permute.xlu0 %553
    %v556 = vperm.slane %v396, 3
    %v557 = vmul.f32 %v550, %v556
    %v558 = vmul.f32 %v554, %v556
    %v559 = vadd.f32 %v546, %v557
    %v560 = vadd.f32 %v547, %v558
    %561 = vset.pattern.permute.xlu0 12
    %562 = vperm.xlu0 %561, %v239
    %v563 = vpop.permute.xlu0 %562
    %565 = vset.pattern.permute.xlu0 12
    %566 = vperm.xlu0 %565, %v394
    %v567 = vpop.permute.xlu0 %566
    %v569 = vperm.slane %v396, 4
    %v570 = vmul.f32 %v563, %v569
    %v571 = vmul.f32 %v567, %v569
    %v572 = vadd.f32 %v559, %v570
    %v573 = vadd.f32 %v560, %v571
    %574 = vset.pattern.permute.xlu0 13
    %575 = vperm.xlu0 %574, %v239
    %v576 = vpop.permute.xlu0 %575
    %578 = vset.pattern.permute.xlu0 13
    %579 = vperm.xlu0 %578, %v394
    %v580 = vpop.permute.xlu0 %579
    %v582 = vperm.slane %v396, 5
    %v583 = vmul.f32 %v576, %v582
    %v584 = vmul.f32 %v580, %v582
    %v585 = vadd.f32 %v572, %v583
    %v586 = vadd.f32 %v573, %v584
    %587 = vset.pattern.permute.xlu0 14
    %588 = vperm.xlu0 %587, %v239
    %v589 = vpop.permute.xlu0 %588
    %591 = vset.pattern.permute.xlu0 14
    %592 = vperm.xlu0 %591, %v394
    %v593 = vpop.permute.xlu0 %592
    %v595 = vperm.slane %v396, 6
    %v596 = vmul.f32 %v589, %v595
    %v597 = vmul.f32 %v593, %v595
    %v598 = vadd.f32 %v585, %v596
    %v599 = vadd.f32 %v586, %v597
    %600 = vset.pattern.permute.xlu0 15
    %601 = vperm.xlu0 %600, %v239
    %v602 = vpop.permute.xlu0 %601
    %604 = vset.pattern.permute.xlu0 15
    %605 = vperm.xlu0 %604, %v394
    %v606 = vpop.permute.xlu0 %605
    %v608 = vperm.slane %v396, 7
    %v609 = vmul.f32 %v602, %v608
    %v610 = vmul.f32 %v606, %v608
    %v611 = vadd.f32 %v598, %v609
    %v612 = vadd.f32 %v599, %v610
    %613 = vset.pattern.permute.xlu0 16
    %614 = vperm.xlu0 %613, %v239
    %v615 = vpop.permute.xlu0 %614
    %617 = vset.pattern.permute.xlu0 16
    %618 = vperm.xlu0 %617, %v394
    %v619 = vpop.permute.xlu0 %618
    %v621 = vperm.slane %v397, 0
    %v622 = vmul.f32 %v615, %v621
    %v623 = vmul.f32 %v619, %v621
    %v624 = vadd.f32 %v611, %v622
    %v625 = vadd.f32 %v612, %v623
    %626 = vset.pattern.permute.xlu0 17
    %627 = vperm.xlu0 %626, %v239
    %v628 = vpop.permute.xlu0 %627
    %630 = vset.pattern.permute.xlu0 17
    %631 = vperm.xlu0 %630, %v394
    %v632 = vpop.permute.xlu0 %631
    %v634 = vperm.slane %v397, 1
    %v635 = vmul.f32 %v628, %v634
    %v636 = vmul.f32 %v632, %v634
    %v637 = vadd.f32 %v624, %v635
    %v638 = vadd.f32 %v625, %v636
    %639 = vset.pattern.permute.xlu0 18
    %640 = vperm.xlu0 %639, %v239
    %v641 = vpop.permute.xlu0 %640
    %643 = vset.pattern.permute.xlu0 18
    %644 = vperm.xlu0 %643, %v394
    %v645 = vpop.permute.xlu0 %644
    %v647 = vperm.slane %v397, 2
    %v648 = vmul.f32 %v641, %v647
    %v649 = vmul.f32 %v645, %v647
    %v650 = vadd.f32 %v637, %v648
    %v651 = vadd.f32 %v638, %v649
    %652 = vset.pattern.permute.xlu0 19
    %653 = vperm.xlu0 %652, %v239
    %v654 = vpop.permute.xlu0 %653
    %656 = vset.pattern.permute.xlu0 19
    %657 = vperm.xlu0 %656, %v394
    %v658 = vpop.permute.xlu0 %657
    %v660 = vperm.slane %v397, 3
    %v661 = vmul.f32 %v654, %v660
    %v662 = vmul.f32 %v658, %v660
    %v663 = vadd.f32 %v650, %v661
    %v664 = vadd.f32 %v651, %v662
    %665 = vset.pattern.permute.xlu0 20
    %666 = vperm.xlu0 %665, %v239
    %v667 = vpop.permute.xlu0 %666
    %669 = vset.pattern.permute.xlu0 20
    %670 = vperm.xlu0 %669, %v394
    %v671 = vpop.permute.xlu0 %670
    %v673 = vperm.slane %v397, 4
    %v674 = vmul.f32 %v667, %v673
    %v675 = vmul.f32 %v671, %v673
    %v676 = vadd.f32 %v663, %v674
    %v677 = vadd.f32 %v664, %v675
    %678 = vset.pattern.permute.xlu0 21
    %679 = vperm.xlu0 %678, %v239
    %v680 = vpop.permute.xlu0 %679
    %682 = vset.pattern.permute.xlu0 21
    %683 = vperm.xlu0 %682, %v394
    %v684 = vpop.permute.xlu0 %683
    %v686 = vperm.slane %v397, 5
    %v687 = vmul.f32 %v680, %v686
    %v688 = vmul.f32 %v684, %v686
    %v689 = vadd.f32 %v676, %v687
    %v690 = vadd.f32 %v677, %v688
    %691 = vset.pattern.permute.xlu0 22
    %692 = vperm.xlu0 %691, %v239
    %v693 = vpop.permute.xlu0 %692
    %695 = vset.pattern.permute.xlu0 22
    %696 = vperm.xlu0 %695, %v394
    %v697 = vpop.permute.xlu0 %696
    %v699 = vperm.slane %v397, 6
    %v700 = vmul.f32 %v693, %v699
    %v701 = vmul.f32 %v697, %v699
    %v702 = vadd.f32 %v689, %v700
    %v703 = vadd.f32 %v690, %v701
    %704 = vset.pattern.permute.xlu0 23
    %705 = vperm.xlu0 %704, %v239
    %v706 = vpop.permute.xlu0 %705
    %708 = vset.pattern.permute.xlu0 23
    %709 = vperm.xlu0 %708, %v394
    %v710 = vpop.permute.xlu0 %709
    %v712 = vperm.slane %v397, 7
    %v713 = vmul.f32 %v706, %v712
    %v714 = vmul.f32 %v710, %v712
    %v715 = vadd.f32 %v702, %v713
    %v716 = vadd.f32 %v703, %v714
    %717 = vset.pattern.permute.xlu0 24
    %718 = vperm.xlu0 %717, %v239
    %v719 = vpop.permute.xlu0 %718
    %721 = vset.pattern.permute.xlu0 24
    %722 = vperm.xlu0 %721, %v394
    %v723 = vpop.permute.xlu0 %722
    %v725 = vperm.slane %v398, 0
    %v726 = vmul.f32 %v719, %v725
    %v727 = vmul.f32 %v723, %v725
    %v728 = vadd.f32 %v715, %v726
    %v729 = vadd.f32 %v716, %v727
    %730 = vset.pattern.permute.xlu0 25
    %731 = vperm.xlu0 %730, %v239
    %v732 = vpop.permute.xlu0 %731
    %734 = vset.pattern.permute.xlu0 25
    %735 = vperm.xlu0 %734, %v394
    %v736 = vpop.permute.xlu0 %735
    %v738 = vperm.slane %v398, 1
    %v739 = vmul.f32 %v732, %v738
    %v740 = vmul.f32 %v736, %v738
    %v741 = vadd.f32 %v728, %v739
    %v742 = vadd.f32 %v729, %v740
    %743 = vset.pattern.permute.xlu0 26
    %744 = vperm.xlu0 %743, %v239
    %v745 = vpop.permute.xlu0 %744
    %747 = vset.pattern.permute.xlu0 26
    %748 = vperm.xlu0 %747, %v394
    %v749 = vpop.permute.xlu0 %748
    %v751 = vperm.slane %v398, 2
    %v752 = vmul.f32 %v745, %v751
    %v753 = vmul.f32 %v749, %v751
    %v754 = vadd.f32 %v741, %v752
    %v755 = vadd.f32 %v742, %v753
    %756 = vset.pattern.permute.xlu0 27
    %757 = vperm.xlu0 %756, %v239
    %v758 = vpop.permute.xlu0 %757
    %760 = vset.pattern.permute.xlu0 27
    %761 = vperm.xlu0 %760, %v394
    %v762 = vpop.permute.xlu0 %761
    %v764 = vperm.slane %v398, 3
    %v765 = vmul.f32 %v758, %v764
    %v766 = vmul.f32 %v762, %v764
    %v767 = vadd.f32 %v754, %v765
    %v768 = vadd.f32 %v755, %v766
    %769 = vset.pattern.permute.xlu0 28
    %770 = vperm.xlu0 %769, %v239
    %v771 = vpop.permute.xlu0 %770
    %773 = vset.pattern.permute.xlu0 28
    %774 = vperm.xlu0 %773, %v394
    %v775 = vpop.permute.xlu0 %774
    %v777 = vperm.slane %v398, 4
    %v778 = vmul.f32 %v771, %v777
    %v779 = vmul.f32 %v775, %v777
    %v780 = vadd.f32 %v767, %v778
    %v781 = vadd.f32 %v768, %v779
    %782 = vset.pattern.permute.xlu0 29
    %783 = vperm.xlu0 %782, %v239
    %v784 = vpop.permute.xlu0 %783
    %786 = vset.pattern.permute.xlu0 29
    %787 = vperm.xlu0 %786, %v394
    %v788 = vpop.permute.xlu0 %787
    %v790 = vperm.slane %v398, 5
    %v791 = vmul.f32 %v784, %v790
    %v792 = vmul.f32 %v788, %v790
    %v793 = vadd.f32 %v780, %v791
    %v794 = vadd.f32 %v781, %v792
    %795 = vset.pattern.permute.xlu0 30
    %796 = vperm.xlu0 %795, %v239
    %v797 = vpop.permute.xlu0 %796
    %799 = vset.pattern.permute.xlu0 30
    %800 = vperm.xlu0 %799, %v394
    %v801 = vpop.permute.xlu0 %800
    %v803 = vperm.slane %v398, 6
    %v804 = vmul.f32 %v797, %v803
    %v805 = vmul.f32 %v801, %v803
    %v806 = vadd.f32 %v793, %v804
    %v807 = vadd.f32 %v794, %v805
    %808 = vset.pattern.permute.xlu0 31
    %809 = vperm.xlu0 %808, %v239
    %v810 = vpop.permute.xlu0 %809
    %812 = vset.pattern.permute.xlu0 31
    %813 = vperm.xlu0 %812, %v394
    %v814 = vpop.permute.xlu0 %813
    %v816 = vperm.slane %v398, 7
    %v817 = vmul.f32 %v810, %v816
    %v818 = vmul.f32 %v814, %v816
    %v819 = vadd.f32 %v806, %v817
    %v820 = vadd.f32 %v807, %v818
    %v821 = vmul.f32 %v819, 30.0
    %v822 = vmul.f32 %v820, 30.0
    %v823 = vand.u32 2147483647, %v821
    %vm824 = vcmp.le.f32.partialorder %v823, 0.7853982
    %vm825 = vcmp.lt.s32.totalorder %v821, 0
    %v826 = vand.u32 %v821, 2139095040
    %v827 = vshrl.u32 %v826, 23
    %v828 = vsub.s32 %v827, 127
    %v829 = vand.u32 2147483647, %v821
    %v830 = vand.u32 %v829, 8388607
    %v831 = vor.u32 %v830, 8388608
    %v832 = vsub.s32 0, %v831
    %v833 = vadd.s32 %v828, 1
    %vm834 = vcmp.gt.s32.totalorder %v833, 0
    %v835 = vsel %vm834, %v833, 0
    %v836 = vshrl.u32 %v835, 5
    %v837 = vand.u32 %v835, 31
    %v838 = vsub.s32 32, %v837
    %v839 = vshrl.u32 683565275, %v838
    %v840 = vshll.u32 683565275, %v837
    %v841 = vshrl.u32 2475754826, %v838
    %v842 = vor.u32 %v840, %v841
    %v843 = vshll.u32 2475754826, %v837
    %v844 = vshrl.u32 2131351028, %v838
    %v845 = vor.u32 %v843, %v844
    %v846 = vshll.u32 2131351028, %v837
    %v847 = vshrl.u32 2102212464, %v838
    %v848 = vor.u32 %v846, %v847
    %v849 = vshll.u32 2102212464, %v837
    %v850 = vshrl.u32 920167782, %v838
    %v851 = vor.u32 %v849, %v850
    %v852 = vshll.u32 920167782, %v837
    %v853 = vshrl.u32 1326507024, %v838
    %v854 = vor.u32 %v852, %v853
    %vm855 = vcmp.lt.s32.totalorder %v836, 1
    %vm856 = vcmp.lt.s32.totalorder %v836, 2
    %vm857 = vcmp.lt.s32.totalorder %v836, 3
    %vm858 = vcmp.lt.s32.totalorder %v836, 4
    %v859 = vsel %vm855, %v839, %v842
    %v860 = vsel %vm858, %v848, 2102212464
    %v861 = vsel %vm857, %v845, %v860
    %v862 = vsel %vm856, %v859, %v861
    %v863 = vsel %vm855, %v842, %v845
    %v864 = vsel %vm858, %v851, 920167782
    %v865 = vsel %vm857, %v848, %v864
    %v866 = vsel %vm856, %v863, %v865
    %v867 = vsel %vm855, %v845, %v848
    %v868 = vsel %vm858, %v854, 1326507024
    %v869 = vsel %vm857, %v851, %v868
    %v870 = vsel %vm856, %v867, %v869
    %v871 = vshll.u32 %v831, 8
    %v872 = vand.u32 %v871, 65535
    %v873 = vshrl.u32 %v871, 16
    %v874 = vand.u32 %v870, 65535
    %v875 = vshrl.u32 %v870, 16
    %v876 = vmul.u32 %v872, %v874
    %v877 = vmul.u32 %v872, %v875
    %v878 = vmul.u32 %v873, %v874
    %v879 = vmul.u32 %v873, %v875
    %v880 = vshll.u32 %v877, 16
    %v881 = vshrl.u32 %v877, 16
    %v882 = vshll.u32 %v878, 16
    %v883 = vshrl.u32 %v878, 16
    %vm884 = vc.u32 %v876, %v880
    %v885 = vsel %vm884, 1, 0
    %v886 = vadd.s32 %v876, %v880
    %v887 = vadd.s32 %v879, %v885
    %vm888 = vc.u32 %v886, %v882
    %v889 = vsel %vm888, 1, 0
    %v890 = vadd.s32 %v886, %v882
    %v891 = vadd.s32 %v887, %v889
    %v892 = vadd.s32 %v891, %v881
    %v893 = vadd.s32 %v892, %v883
    %v894 = vand.u32 %v871, 65535
    %v895 = vshrl.u32 %v871, 16
    %v896 = vand.u32 %v866, 65535
    %v897 = vshrl.u32 %v866, 16
    %v898 = vmul.u32 %v894, %v896
    %v899 = vmul.u32 %v894, %v897
    %v900 = vmul.u32 %v895, %v896
    %v901 = vmul.u32 %v895, %v897
    %v902 = vshll.u32 %v899, 16
    %v903 = vshrl.u32 %v899, 16
    %v904 = vshll.u32 %v900, 16
    %v905 = vshrl.u32 %v900, 16
    %vm906 = vc.u32 %v898, %v902
    %v907 = vsel %vm906, 1, 0
    %v908 = vadd.s32 %v898, %v902
    %v909 = vadd.s32 %v901, %v907
    %vm910 = vc.u32 %v908, %v904
    %v911 = vsel %vm910, 1, 0
    %v912 = vadd.s32 %v908, %v904
    %v913 = vadd.s32 %v909, %v911
    %v914 = vadd.s32 %v913, %v903
    %v915 = vadd.s32 %v914, %v905
    %v916 = vmul.u32 %v871, %v862
    %v917 = vadd.s32 %v893, %v912
    %vm918 = vc.u32 %v893, %v912
    %v919 = vadd.s32 %v915, 1
    %v920 = vsel %vm918, %v919, %v915
    %v921 = vadd.s32 %v916, %v920
    %v922 = vadd.s32 %v921, 536870912
    %v923 = vshrl.u32 %v922, 30
    %v924 = vshll.u32 %v923, 30
    %v925 = vsub.s32 %v921, %v924
    %vm926 = vcmp.lt.s32.totalorder %v925, 0
    %v927 = vsub.s32 0, %v925
    %v928 = vsel %vm926, %v927, %v925
    %v929 = vclz %v928
    %v930 = vsub.s32 %v929, 2
    %vm931 = vcmp.gt.s32.totalorder 0, %v930
    %v932 = vsel %vm931, 0, %v930
    %v933 = vsub.s32 32, %v932
    %v934 = vshll.u32 %v925, %v932
    %v935 = vshrl.u32 %v917, %v933
    %v936 = vor.u32 %v934, %v935
    %v937 = vsub.s32 4294967266, %v932
    %v938 = vadd.s32 %v937, 127
    %v939 = vshll.u32 %v938, 23
    %v940 = vor.u32 4788187, %v939
    %v941 = vand.u32 2147483647, %v940
    %v943 = vcvt.s32.f32 %v936
    %v944 = vmul.f32 %v943, %v941
    %v945 = vxor.u32 %v944, 2147483648
    %v946 = vsel %vm825, %v945, %v944
    %v947 = vsub.s32 4, %v923
    %v948 = vsel %vm825, %v947, %v923
    %v949 = vsel %vm824, %v821, %v946
    %v950 = vsel %vm824, 0, %v948
    %v951 = vmul.f32 %v949, %v949
    %v952 = vmul.f32 %v951, -0.001358992
    %v953 = vadd.f32 %v952, 0.041655596
    %v954 = vmul.f32 %v951, %v953
    %v955 = vadd.f32 %v954, -0.4999988
    %v956 = vmul.f32 %v951, %v955
    %v957 = vadd.f32 1.0, %v956
    %v958 = vmul.f32 %v949, %v949
    %v959 = vmul.f32 %v958, -0.00019511016
    %v960 = vadd.f32 %v959, 0.008332121
    %v961 = vmul.f32 %v958, %v960
    %v962 = vadd.f32 %v961, -0.16666654
    %v963 = vmul.f32 %v958, %v962
    %v964 = vadd.f32 %v963, 1.0
    %v965 = vmul.f32 %v964, %v949
    %vm966 = vweird.f32 %v821
    %v967 = vadd.s32 %v950, 3
    %v968 = vand.u32 %v967, 3
    %vm969 = vcmp.lt.s32.totalorder %v968, 2
    %vm970 = vcmp.eq.s32.totalorder %v968, 0
    %v971 = vxor.u32 %v965, 2147483648
    %v972 = vsel %vm970, %v957, %v971
    %vm973 = vcmp.eq.s32.totalorder %v968, 2
    %v974 = vxor.u32 %v957, 2147483648
    %v975 = vsel %vm973, %v974, %v965
    %v976 = vsel %vm969, %v972, %v975
    %v977 = vsel %vm966, nan, %v976
    %v978 = vand.u32 2147483647, %v822
    %vm979 = vcmp.le.f32.partialorder %v978, 0.7853982
    %vm980 = vcmp.lt.s32.totalorder %v822, 0
    %v981 = vand.u32 %v822, 2139095040
    %v982 = vshrl.u32 %v981, 23
    %v983 = vsub.s32 %v982, 127
    %v984 = vand.u32 2147483647, %v822
    %v985 = vand.u32 %v984, 8388607
    %v986 = vor.u32 %v985, 8388608
    %v987 = vsub.s32 0, %v986
    %v988 = vadd.s32 %v983, 1
    %vm989 = vcmp.gt.s32.totalorder %v988, 0
    %v990 = vsel %vm989, %v988, 0
    %v991 = vshrl.u32 %v990, 5
    %v992 = vand.u32 %v990, 31
    %v993 = vsub.s32 32, %v992
    %v994 = vshrl.u32 683565275, %v993
    %v995 = vshll.u32 683565275, %v992
    %v996 = vshrl.u32 2475754826, %v993
    %v997 = vor.u32 %v995, %v996
    %v998 = vshll.u32 2475754826, %v992
    %v999 = vshrl.u32 2131351028, %v993
    %v1000 = vor.u32 %v998, %v999
    %v1001 = vshll.u32 2131351028, %v992
    %v1002 = vshrl.u32 2102212464, %v993
    %v1003 = vor.u32 %v1001, %v1002
    %v1004 = vshll.u32 2102212464, %v992
    %v1005 = vshrl.u32 920167782, %v993
    %v1006 = vor.u32 %v1004, %v1005
    %v1007 = vshll.u32 920167782, %v992
    %v1008 = vshrl.u32 1326507024, %v993
    %v1009 = vor.u32 %v1007, %v1008
    %vm1010 = vcmp.lt.s32.totalorder %v991, 1
    %vm1011 = vcmp.lt.s32.totalorder %v991, 2
    %vm1012 = vcmp.lt.s32.totalorder %v991, 3
    %vm1013 = vcmp.lt.s32.totalorder %v991, 4
    %v1014 = vsel %vm1010, %v994, %v997
    %v1015 = vsel %vm1013, %v1003, 2102212464
    %v1016 = vsel %vm1012, %v1000, %v1015
    %v1017 = vsel %vm1011, %v1014, %v1016
    %v1018 = vsel %vm1010, %v997, %v1000
    %v1019 = vsel %vm1013, %v1006, 920167782
    %v1020 = vsel %vm1012, %v1003, %v1019
    %v1021 = vsel %vm1011, %v1018, %v1020
    %v1022 = vsel %vm1010, %v1000, %v1003
    %v1023 = vsel %vm1013, %v1009, 1326507024
    %v1024 = vsel %vm1012, %v1006, %v1023
    %v1025 = vsel %vm1011, %v1022, %v1024
    %v1026 = vshll.u32 %v986, 8
    %v1027 = vand.u32 %v1026, 65535
    %v1028 = vshrl.u32 %v1026, 16
    %v1029 = vand.u32 %v1025, 65535
    %v1030 = vshrl.u32 %v1025, 16
    %v1031 = vmul.u32 %v1027, %v1029
    %v1032 = vmul.u32 %v1027, %v1030
    %v1033 = vmul.u32 %v1028, %v1029
    %v1034 = vmul.u32 %v1028, %v1030
    %v1035 = vshll.u32 %v1032, 16
    %v1036 = vshrl.u32 %v1032, 16
    %v1037 = vshll.u32 %v1033, 16
    %v1038 = vshrl.u32 %v1033, 16
    %vm1039 = vc.u32 %v1031, %v1035
    %v1040 = vsel %vm1039, 1, 0
    %v1041 = vadd.s32 %v1031, %v1035
    %v1042 = vadd.s32 %v1034, %v1040
    %vm1043 = vc.u32 %v1041, %v1037
    %v1044 = vsel %vm1043, 1, 0
    %v1045 = vadd.s32 %v1041, %v1037
    %v1046 = vadd.s32 %v1042, %v1044
    %v1047 = vadd.s32 %v1046, %v1036
    %v1048 = vadd.s32 %v1047, %v1038
    %v1049 = vand.u32 %v1026, 65535
    %v1050 = vshrl.u32 %v1026, 16
    %v1051 = vand.u32 %v1021, 65535
    %v1052 = vshrl.u32 %v1021, 16
    %v1053 = vmul.u32 %v1049, %v1051
    %v1054 = vmul.u32 %v1049, %v1052
    %v1055 = vmul.u32 %v1050, %v1051
    %v1056 = vmul.u32 %v1050, %v1052
    %v1057 = vshll.u32 %v1054, 16
    %v1058 = vshrl.u32 %v1054, 16
    %v1059 = vshll.u32 %v1055, 16
    %v1060 = vshrl.u32 %v1055, 16
    %vm1061 = vc.u32 %v1053, %v1057
    %v1062 = vsel %vm1061, 1, 0
    %v1063 = vadd.s32 %v1053, %v1057
    %v1064 = vadd.s32 %v1056, %v1062
    %vm1065 = vc.u32 %v1063, %v1059
    %v1066 = vsel %vm1065, 1, 0
    %v1067 = vadd.s32 %v1063, %v1059
    %v1068 = vadd.s32 %v1064, %v1066
    %v1069 = vadd.s32 %v1068, %v1058
    %v1070 = vadd.s32 %v1069, %v1060
    %v1071 = vmul.u32 %v1026, %v1017
    %v1072 = vadd.s32 %v1048, %v1067
    %vm1073 = vc.u32 %v1048, %v1067
    %v1074 = vadd.s32 %v1070, 1
    %v1075 = vsel %vm1073, %v1074, %v1070
    %v1076 = vadd.s32 %v1071, %v1075
    %v1077 = vadd.s32 %v1076, 536870912
    %v1078 = vshrl.u32 %v1077, 30
    %v1079 = vshll.u32 %v1078, 30
    %v1080 = vsub.s32 %v1076, %v1079
    %vm1081 = vcmp.lt.s32.totalorder %v1080, 0
    %v1082 = vsub.s32 0, %v1080
    %v1083 = vsel %vm1081, %v1082, %v1080
    %v1084 = vclz %v1083
    %v1085 = vsub.s32 %v1084, 2
    %vm1086 = vcmp.gt.s32.totalorder 0, %v1085
    %v1087 = vsel %vm1086, 0, %v1085
    %v1088 = vsub.s32 32, %v1087
    %v1089 = vshll.u32 %v1080, %v1087
    %v1090 = vshrl.u32 %v1072, %v1088
    %v1091 = vor.u32 %v1089, %v1090
    %v1092 = vsub.s32 4294967266, %v1087
    %v1093 = vadd.s32 %v1092, 127
    %v1094 = vshll.u32 %v1093, 23
    %v1095 = vor.u32 4788187, %v1094
    %v1096 = vand.u32 2147483647, %v1095
    %v1098 = vcvt.s32.f32 %v1091
    %v1099 = vmul.f32 %v1098, %v1096
    %v1100 = vxor.u32 %v1099, 2147483648
    %v1101 = vsel %vm980, %v1100, %v1099
    %v1102 = vsub.s32 4, %v1078
    %v1103 = vsel %vm980, %v1102, %v1078
    %v1104 = vsel %vm979, %v822, %v1101
    %v1105 = vsel %vm979, 0, %v1103
    %v1106 = vmul.f32 %v1104, %v1104
    %v1107 = vmul.f32 %v1106, -0.001358992
    %v1108 = vadd.f32 %v1107, 0.041655596
    %v1109 = vmul.f32 %v1106, %v1108
    %v1110 = vadd.f32 %v1109, -0.4999988
    %v1111 = vmul.f32 %v1106, %v1110
    %v1112 = vadd.f32 1.0, %v1111
    %v1113 = vmul.f32 %v1104, %v1104
    %v1114 = vmul.f32 %v1113, -0.00019511016
    %v1115 = vadd.f32 %v1114, 0.008332121
    %v1116 = vmul.f32 %v1113, %v1115
    %v1117 = vadd.f32 %v1116, -0.16666654
    %v1118 = vmul.f32 %v1113, %v1117
    %v1119 = vadd.f32 %v1118, 1.0
    %v1120 = vmul.f32 %v1119, %v1104
    %vm1121 = vweird.f32 %v822
    %v1122 = vadd.s32 %v1105, 3
    %v1123 = vand.u32 %v1122, 3
    %vm1124 = vcmp.lt.s32.totalorder %v1123, 2
    %vm1125 = vcmp.eq.s32.totalorder %v1123, 0
    %v1126 = vxor.u32 %v1120, 2147483648
    %v1127 = vsel %vm1125, %v1112, %v1126
    %vm1128 = vcmp.eq.s32.totalorder %v1123, 2
    %v1129 = vxor.u32 %v1112, 2147483648
    %v1130 = vsel %vm1128, %v1129, %v1120
    %v1131 = vsel %vm1124, %v1127, %v1130
    %v1132 = vsel %vm1121, nan, %v1131
    %v1133 = vld [vmem:[#allocation5] sm:$0xff]
    %v1134 = vld [vmem:[#allocation5 + $0x8] sm:$0xff]
    %v1135 = vld [vmem:[#allocation5 + $0x10] sm:$0xff]
    %v1136 = vld [vmem:[#allocation5 + $0x18] sm:$0xff]
    %v1137 = vld [vmem:[%s6] sm:$0x1]
    %v1139 = vperm.slane %v1137, 0
    %1142 = vset.pattern.permute.xlu0 0
    %1143 = vperm.xlu0 %1142, %v977
    %v1144 = vpop.permute.xlu0 %1143
    %1147 = vset.pattern.permute.xlu0 0
    %1148 = vperm.xlu0 %1147, %v1132
    %v1149 = vpop.permute.xlu0 %1148
    %v1151 = vperm.slane %v1133, 0
    %v1152 = vmul.f32 %v1144, %v1151
    %v1153 = vmul.f32 %v1149, %v1151
    %v1154 = vadd.f32 %v1139, %v1152
    %v1155 = vadd.f32 %v1139, %v1153
    %1156 = vset.pattern.permute.xlu0 1
    %1157 = vperm.xlu0 %1156, %v977
    %v1158 = vpop.permute.xlu0 %1157
    %1160 = vset.pattern.permute.xlu0 1
    %1161 = vperm.xlu0 %1160, %v1132
    %v1162 = vpop.permute.xlu0 %1161
    %v1164 = vperm.slane %v1133, 1
    %v1165 = vmul.f32 %v1158, %v1164
    %v1166 = vmul.f32 %v1162, %v1164
    %v1167 = vadd.f32 %v1154, %v1165
    %v1168 = vadd.f32 %v1155, %v1166
    %1169 = vset.pattern.permute.xlu0 2
    %1170 = vperm.xlu0 %1169, %v977
    %v1171 = vpop.permute.xlu0 %1170
    %1173 = vset.pattern.permute.xlu0 2
    %1174 = vperm.xlu0 %1173, %v1132
    %v1175 = vpop.permute.xlu0 %1174
    %v1177 = vperm.slane %v1133, 2
    %v1178 = vmul.f32 %v1171, %v1177
    %v1179 = vmul.f32 %v1175, %v1177
    %v1180 = vadd.f32 %v1167, %v1178
    %v1181 = vadd.f32 %v1168, %v1179
    %1182 = vset.pattern.permute.xlu0 3
    %1183 = vperm.xlu0 %1182, %v977
    %v1184 = vpop.permute.xlu0 %1183
    %1186 = vset.pattern.permute.xlu0 3
    %1187 = vperm.xlu0 %1186, %v1132
    %v1188 = vpop.permute.xlu0 %1187
    %v1190 = vperm.slane %v1133, 3
    %v1191 = vmul.f32 %v1184, %v1190
    %v1192 = vmul.f32 %v1188, %v1190
    %v1193 = vadd.f32 %v1180, %v1191
    %v1194 = vadd.f32 %v1181, %v1192
    %1195 = vset.pattern.permute.xlu0 4
    %1196 = vperm.xlu0 %1195, %v977
    %v1197 = vpop.permute.xlu0 %1196
    %1199 = vset.pattern.permute.xlu0 4
    %1200 = vperm.xlu0 %1199, %v1132
    %v1201 = vpop.permute.xlu0 %1200
    %v1203 = vperm.slane %v1133, 4
    %v1204 = vmul.f32 %v1197, %v1203
    %v1205 = vmul.f32 %v1201, %v1203
    %v1206 = vadd.f32 %v1193, %v1204
    %v1207 = vadd.f32 %v1194, %v1205
    %1208 = vset.pattern.permute.xlu0 5
    %1209 = vperm.xlu0 %1208, %v977
    %v1210 = vpop.permute.xlu0 %1209
    %1212 = vset.pattern.permute.xlu0 5
    %1213 = vperm.xlu0 %1212, %v1132
    %v1214 = vpop.permute.xlu0 %1213
    %v1216 = vperm.slane %v1133, 5
    %v1217 = vmul.f32 %v1210, %v1216
    %v1218 = vmul.f32 %v1214, %v1216
    %v1219 = vadd.f32 %v1206, %v1217
    %v1220 = vadd.f32 %v1207, %v1218
    %1221 = vset.pattern.permute.xlu0 6
    %1222 = vperm.xlu0 %1221, %v977
    %v1223 = vpop.permute.xlu0 %1222
    %1225 = vset.pattern.permute.xlu0 6
    %1226 = vperm.xlu0 %1225, %v1132
    %v1227 = vpop.permute.xlu0 %1226
    %v1229 = vperm.slane %v1133, 6
    %v1230 = vmul.f32 %v1223, %v1229
    %v1231 = vmul.f32 %v1227, %v1229
    %v1232 = vadd.f32 %v1219, %v1230
    %v1233 = vadd.f32 %v1220, %v1231
    %1234 = vset.pattern.permute.xlu0 7
    %1235 = vperm.xlu0 %1234, %v977
    %v1236 = vpop.permute.xlu0 %1235
    %1238 = vset.pattern.permute.xlu0 7
    %1239 = vperm.xlu0 %1238, %v1132
    %v1240 = vpop.permute.xlu0 %1239
    %v1242 = vperm.slane %v1133, 7
    %v1243 = vmul.f32 %v1236, %v1242
    %v1244 = vmul.f32 %v1240, %v1242
    %v1245 = vadd.f32 %v1232, %v1243
    %v1246 = vadd.f32 %v1233, %v1244
    %1247 = vset.pattern.permute.xlu0 8
    %1248 = vperm.xlu0 %1247, %v977
    %v1249 = vpop.permute.xlu0 %1248
    %1251 = vset.pattern.permute.xlu0 8
    %1252 = vperm.xlu0 %1251, %v1132
    %v1253 = vpop.permute.xlu0 %1252
    %v1255 = vperm.slane %v1134, 0
    %v1256 = vmul.f32 %v1249, %v1255
    %v1257 = vmul.f32 %v1253, %v1255
    %v1258 = vadd.f32 %v1245, %v1256
    %v1259 = vadd.f32 %v1246, %v1257
    %1260 = vset.pattern.permute.xlu0 9
    %1261 = vperm.xlu0 %1260, %v977
    %v1262 = vpop.permute.xlu0 %1261
    %1264 = vset.pattern.permute.xlu0 9
    %1265 = vperm.xlu0 %1264, %v1132
    %v1266 = vpop.permute.xlu0 %1265
    %v1268 = vperm.slane %v1134, 1
    %v1269 = vmul.f32 %v1262, %v1268
    %v1270 = vmul.f32 %v1266, %v1268
    %v1271 = vadd.f32 %v1258, %v1269
    %v1272 = vadd.f32 %v1259, %v1270
    %1273 = vset.pattern.permute.xlu0 10
    %1274 = vperm.xlu0 %1273, %v977
    %v1275 = vpop.permute.xlu0 %1274
    %1277 = vset.pattern.permute.xlu0 10
    %1278 = vperm.xlu0 %1277, %v1132
    %v1279 = vpop.permute.xlu0 %1278
    %v1281 = vperm.slane %v1134, 2
    %v1282 = vmul.f32 %v1275, %v1281
    %v1283 = vmul.f32 %v1279, %v1281
    %v1284 = vadd.f32 %v1271, %v1282
    %v1285 = vadd.f32 %v1272, %v1283
    %1286 = vset.pattern.permute.xlu0 11
    %1287 = vperm.xlu0 %1286, %v977
    %v1288 = vpop.permute.xlu0 %1287
    %1290 = vset.pattern.permute.xlu0 11
    %1291 = vperm.xlu0 %1290, %v1132
    %v1292 = vpop.permute.xlu0 %1291
    %v1294 = vperm.slane %v1134, 3
    %v1295 = vmul.f32 %v1288, %v1294
    %v1296 = vmul.f32 %v1292, %v1294
    %v1297 = vadd.f32 %v1284, %v1295
    %v1298 = vadd.f32 %v1285, %v1296
    %1299 = vset.pattern.permute.xlu0 12
    %1300 = vperm.xlu0 %1299, %v977
    %v1301 = vpop.permute.xlu0 %1300
    %1303 = vset.pattern.permute.xlu0 12
    %1304 = vperm.xlu0 %1303, %v1132
    %v1305 = vpop.permute.xlu0 %1304
    %v1307 = vperm.slane %v1134, 4
    %v1308 = vmul.f32 %v1301, %v1307
    %v1309 = vmul.f32 %v1305, %v1307
    %v1310 = vadd.f32 %v1297, %v1308
    %v1311 = vadd.f32 %v1298, %v1309
    %1312 = vset.pattern.permute.xlu0 13
    %1313 = vperm.xlu0 %1312, %v977
    %v1314 = vpop.permute.xlu0 %1313
    %1316 = vset.pattern.permute.xlu0 13
    %1317 = vperm.xlu0 %1316, %v1132
    %v1318 = vpop.permute.xlu0 %1317
    %v1320 = vperm.slane %v1134, 5
    %v1321 = vmul.f32 %v1314, %v1320
    %v1322 = vmul.f32 %v1318, %v1320
    %v1323 = vadd.f32 %v1310, %v1321
    %v1324 = vadd.f32 %v1311, %v1322
    %1325 = vset.pattern.permute.xlu0 14
    %1326 = vperm.xlu0 %1325, %v977
    %v1327 = vpop.permute.xlu0 %1326
    %1329 = vset.pattern.permute.xlu0 14
    %1330 = vperm.xlu0 %1329, %v1132
    %v1331 = vpop.permute.xlu0 %1330
    %v1333 = vperm.slane %v1134, 6
    %v1334 = vmul.f32 %v1327, %v1333
    %v1335 = vmul.f32 %v1331, %v1333
    %v1336 = vadd.f32 %v1323, %v1334
    %v1337 = vadd.f32 %v1324, %v1335
    %1338 = vset.pattern.permute.xlu0 15
    %1339 = vperm.xlu0 %1338, %v977
    %v1340 = vpop.permute.xlu0 %1339
    %1342 = vset.pattern.permute.xlu0 15
    %1343 = vperm.xlu0 %1342, %v1132
    %v1344 = vpop.permute.xlu0 %1343
    %v1346 = vperm.slane %v1134, 7
    %v1347 = vmul.f32 %v1340, %v1346
    %v1348 = vmul.f32 %v1344, %v1346
    %v1349 = vadd.f32 %v1336, %v1347
    %v1350 = vadd.f32 %v1337, %v1348
    %1351 = vset.pattern.permute.xlu0 16
    %1352 = vperm.xlu0 %1351, %v977
    %v1353 = vpop.permute.xlu0 %1352
    %1355 = vset.pattern.permute.xlu0 16
    %1356 = vperm.xlu0 %1355, %v1132
    %v1357 = vpop.permute.xlu0 %1356
    %v1359 = vperm.slane %v1135, 0
    %v1360 = vmul.f32 %v1353, %v1359
    %v1361 = vmul.f32 %v1357, %v1359
    %v1362 = vadd.f32 %v1349, %v1360
    %v1363 = vadd.f32 %v1350, %v1361
    %1364 = vset.pattern.permute.xlu0 17
    %1365 = vperm.xlu0 %1364, %v977
    %v1366 = vpop.permute.xlu0 %1365
    %1368 = vset.pattern.permute.xlu0 17
    %1369 = vperm.xlu0 %1368, %v1132
    %v1370 = vpop.permute.xlu0 %1369
    %v1372 = vperm.slane %v1135, 1
    %v1373 = vmul.f32 %v1366, %v1372
    %v1374 = vmul.f32 %v1370, %v1372
    %v1375 = vadd.f32 %v1362, %v1373
    %v1376 = vadd.f32 %v1363, %v1374
    %1377 = vset.pattern.permute.xlu0 18
    %1378 = vperm.xlu0 %1377, %v977
    %v1379 = vpop.permute.xlu0 %1378
    %1381 = vset.pattern.permute.xlu0 18
    %1382 = vperm.xlu0 %1381, %v1132
    %v1383 = vpop.permute.xlu0 %1382
    %v1385 = vperm.slane %v1135, 2
    %v1386 = vmul.f32 %v1379, %v1385
    %v1387 = vmul.f32 %v1383, %v1385
    %v1388 = vadd.f32 %v1375, %v1386
    %v1389 = vadd.f32 %v1376, %v1387
    %1390 = vset.pattern.permute.xlu0 19
    %1391 = vperm.xlu0 %1390, %v977
    %v1392 = vpop.permute.xlu0 %1391
    %1394 = vset.pattern.permute.xlu0 19
    %1395 = vperm.xlu0 %1394, %v1132
    %v1396 = vpop.permute.xlu0 %1395
    %v1398 = vperm.slane %v1135, 3
    %v1399 = vmul.f32 %v1392, %v1398
    %v1400 = vmul.f32 %v1396, %v1398
    %v1401 = vadd.f32 %v1388, %v1399
    %v1402 = vadd.f32 %v1389, %v1400
    %1403 = vset.pattern.permute.xlu0 20
    %1404 = vperm.xlu0 %1403, %v977
    %v1405 = vpop.permute.xlu0 %1404
    %1407 = vset.pattern.permute.xlu0 20
    %1408 = vperm.xlu0 %1407, %v1132
    %v1409 = vpop.permute.xlu0 %1408
    %v1411 = vperm.slane %v1135, 4
    %v1412 = vmul.f32 %v1405, %v1411
    %v1413 = vmul.f32 %v1409, %v1411
    %v1414 = vadd.f32 %v1401, %v1412
    %v1415 = vadd.f32 %v1402, %v1413
    %1416 = vset.pattern.permute.xlu0 21
    %1417 = vperm.xlu0 %1416, %v977
    %v1418 = vpop.permute.xlu0 %1417
    %1420 = vset.pattern.permute.xlu0 21
    %1421 = vperm.xlu0 %1420, %v1132
    %v1422 = vpop.permute.xlu0 %1421
    %v1424 = vperm.slane %v1135, 5
    %v1425 = vmul.f32 %v1418, %v1424
    %v1426 = vmul.f32 %v1422, %v1424
    %v1427 = vadd.f32 %v1414, %v1425
    %v1428 = vadd.f32 %v1415, %v1426
    %1429 = vset.pattern.permute.xlu0 22
    %1430 = vperm.xlu0 %1429, %v977
    %v1431 = vpop.permute.xlu0 %1430
    %1433 = vset.pattern.permute.xlu0 22
    %1434 = vperm.xlu0 %1433, %v1132
    %v1435 = vpop.permute.xlu0 %1434
    %v1437 = vperm.slane %v1135, 6
    %v1438 = vmul.f32 %v1431, %v1437
    %v1439 = vmul.f32 %v1435, %v1437
    %v1440 = vadd.f32 %v1427, %v1438
    %v1441 = vadd.f32 %v1428, %v1439
    %1442 = vset.pattern.permute.xlu0 23
    %1443 = vperm.xlu0 %1442, %v977
    %v1444 = vpop.permute.xlu0 %1443
    %1446 = vset.pattern.permute.xlu0 23
    %1447 = vperm.xlu0 %1446, %v1132
    %v1448 = vpop.permute.xlu0 %1447
    %v1450 = vperm.slane %v1135, 7
    %v1451 = vmul.f32 %v1444, %v1450
    %v1452 = vmul.f32 %v1448, %v1450
    %v1453 = vadd.f32 %v1440, %v1451
    %v1454 = vadd.f32 %v1441, %v1452
    %1455 = vset.pattern.permute.xlu0 24
    %1456 = vperm.xlu0 %1455, %v977
    %v1457 = vpop.permute.xlu0 %1456
    %1459 = vset.pattern.permute.xlu0 24
    %1460 = vperm.xlu0 %1459, %v1132
    %v1461 = vpop.permute.xlu0 %1460
    %v1463 = vperm.slane %v1136, 0
    %v1464 = vmul.f32 %v1457, %v1463
    %v1465 = vmul.f32 %v1461, %v1463
    %v1466 = vadd.f32 %v1453, %v1464
    %v1467 = vadd.f32 %v1454, %v1465
    %1468 = vset.pattern.permute.xlu0 25
    %1469 = vperm.xlu0 %1468, %v977
    %v1470 = vpop.permute.xlu0 %1469
    %1472 = vset.pattern.permute.xlu0 25
    %1473 = vperm.xlu0 %1472, %v1132
    %v1474 = vpop.permute.xlu0 %1473
    %v1476 = vperm.slane %v1136, 1
    %v1477 = vmul.f32 %v1470, %v1476
    %v1478 = vmul.f32 %v1474, %v1476
    %v1479 = vadd.f32 %v1466, %v1477
    %v1480 = vadd.f32 %v1467, %v1478
    %1481 = vset.pattern.permute.xlu0 26
    %1482 = vperm.xlu0 %1481, %v977
    %v1483 = vpop.permute.xlu0 %1482
    %1485 = vset.pattern.permute.xlu0 26
    %1486 = vperm.xlu0 %1485, %v1132
    %v1487 = vpop.permute.xlu0 %1486
    %v1489 = vperm.slane %v1136, 2
    %v1490 = vmul.f32 %v1483, %v1489
    %v1491 = vmul.f32 %v1487, %v1489
    %v1492 = vadd.f32 %v1479, %v1490
    %v1493 = vadd.f32 %v1480, %v1491
    %1494 = vset.pattern.permute.xlu0 27
    %1495 = vperm.xlu0 %1494, %v977
    %v1496 = vpop.permute.xlu0 %1495
    %1498 = vset.pattern.permute.xlu0 27
    %1499 = vperm.xlu0 %1498, %v1132
    %v1500 = vpop.permute.xlu0 %1499
    %v1502 = vperm.slane %v1136, 3
    %v1503 = vmul.f32 %v1496, %v1502
    %v1504 = vmul.f32 %v1500, %v1502
    %v1505 = vadd.f32 %v1492, %v1503
    %v1506 = vadd.f32 %v1493, %v1504
    %1507 = vset.pattern.permute.xlu0 28
    %1508 = vperm.xlu0 %1507, %v977
    %v1509 = vpop.permute.xlu0 %1508
    %1511 = vset.pattern.permute.xlu0 28
    %1512 = vperm.xlu0 %1511, %v1132
    %v1513 = vpop.permute.xlu0 %1512
    %v1515 = vperm.slane %v1136, 4
    %v1516 = vmul.f32 %v1509, %v1515
    %v1517 = vmul.f32 %v1513, %v1515
    %v1518 = vadd.f32 %v1505, %v1516
    %v1519 = vadd.f32 %v1506, %v1517
    %1520 = vset.pattern.permute.xlu0 29
    %1521 = vperm.xlu0 %1520, %v977
    %v1522 = vpop.permute.xlu0 %1521
    %1524 = vset.pattern.permute.xlu0 29
    %1525 = vperm.xlu0 %1524, %v1132
    %v1526 = vpop.permute.xlu0 %1525
    %v1528 = vperm.slane %v1136, 5
    %v1529 = vmul.f32 %v1522, %v1528
    %v1530 = vmul.f32 %v1526, %v1528
    %v1531 = vadd.f32 %v1518, %v1529
    %v1532 = vadd.f32 %v1519, %v1530
    %1533 = vset.pattern.permute.xlu0 30
    %1534 = vperm.xlu0 %1533, %v977
    %v1535 = vpop.permute.xlu0 %1534
    %1537 = vset.pattern.permute.xlu0 30
    %1538 = vperm.xlu0 %1537, %v1132
    %v1539 = vpop.permute.xlu0 %1538
    %v1541 = vperm.slane %v1136, 6
    %v1542 = vmul.f32 %v1535, %v1541
    %v1543 = vmul.f32 %v1539, %v1541
    %v1544 = vadd.f32 %v1531, %v1542
    %v1545 = vadd.f32 %v1532, %v1543
    %1546 = vset.pattern.permute.xlu0 31
    %1547 = vperm.xlu0 %1546, %v977
    %v1548 = vpop.permute.xlu0 %1547
    %1550 = vset.pattern.permute.xlu0 31
    %1551 = vperm.xlu0 %1550, %v1132
    %v1552 = vpop.permute.xlu0 %1551
    %v1554 = vperm.slane %v1136, 7
    %v1555 = vmul.f32 %v1548, %v1554
    %v1556 = vmul.f32 %v1552, %v1554
    %v1557 = vadd.f32 %v1544, %v1555
    %v1558 = vadd.f32 %v1545, %v1556
    %vm1559 = vcmask 261120
    %1560 = vst.msk [vmem:[#allocation7] sm:$0xff] %vm1559, %v1557
    %1561 = vst.msk [vmem:[#allocation7 + $0x8] sm:$0xff] %vm1559, %v1558
    // Predicated region
    $region38: #{tpu_custom_call.1} parent=1 // pred_check
      _
    $region39: #{tpu_custom_call.1} parent=1 // pred_check_branch
      %1563 = sbr.rel (0) target = $region41
    $region40: #{tpu_custom_call.1} parent=1 // pred_region
      %1565 = vsyncadd [#allocation4], 0
      %s1566 = sshll.u32 [#allocation7], 4
      %s1567 = int_to_ptr.vmem [resolvable:$true] %s1566
      %s1568 = sshll.u32 %s7, 4
      %s1569 = int_to_ptr.hbm [resolvable:$true] %s1568
      %1574 = dma.vmem_to_hbm [thread:$0]  %s1567, 256, %s1569, [#allocation4], 128, 128, 8
    $region41: #{tpu_custom_call.1} parent=1 // pred_fallthru
      _
    // Predicated region
    $region42: #{tpu_custom_call.1} parent=1 // pred_check
      _
    $region43: #{tpu_custom_call.1} parent=1 // pred_check_branch
      %1576 = sbr.rel (0) target = $region45
    $region44: #{tpu_custom_call.1} parent=1 // pred_region
      %1578 = dma.done [#allocation4], 256
    $region45: #{tpu_custom_call.1} parent=1 // pred_fallthru
      _
    %1579 = vsyncpa [#allocation3], 1
    %1580 = vsyncpa [#allocation6], 1
    %1581 = vsyncpa [#allocation4], 1

</llo_original>
